<compile_context>
chip_gen: v6e
topology: v6e:2x2x1
jax: 0.10.0
libtpu: 0.0.40
codegen_flags: <defaults>
</compile_context>

<pallas_src>
import functools
import math

import jax
import jax.numpy as jnp
from jax.experimental import pallas as pl
from jax.experimental.pallas import tpu as pltpu

EPS_PAIRWISE = 1e-6   # torch.nn.functional.pairwise_distance default eps
LANES = 128


def _pick_tile(n, target, align):
    """Largest aligned divisor of n that is <= target; if none exists, the
    smallest aligned divisor above target (bounds VMEM for awkward sizes);
    else the full dim (always a legal block)."""
    if n <= target:
        return n
    for t in range(target - target % align, 0, -align):
        if n % t == 0:
            return t
    for t in range(target + align, n, align):
        if n % t == 0:
            return t
    # TODO(synk): pad n to a multiple of `align` host-side for pathological sizes.
    return n


def _finalize(emb, mask_ref, dist_ref, stats_ref, d_valid):
    """Mask, pairwise distances and per-tile partial norm sums (last K step)."""
    mask = jnp.maximum(mask_ref[...], 0.0)               # learned mask -> relu
    memb = [e * mask for e in emb]                        # masked embeddings

    # pairwise L2 distance: eps is added per *real* feature only, so the lane
    # padding beyond D contributes exactly zero.
    dp = mask.shape[-1]
    lane = jax.lax.broadcasted_iota(jnp.int32, (1, dp), 1)
    eps = jnp.where(lane < d_valid, EPS_PAIRWISE, 0.0).astype(jnp.float32)
    da = memb[0] - memb[1] + eps
    db = memb[0] - memb[2] + eps
    dist_a = jnp.sqrt(jnp.sum(da * da, axis=-1, keepdims=True))     # [TB, 1]
    dist_b = jnp.sqrt(jnp.sum(db * db, axis=-1, keepdims=True))
    dist_ref[...] = jnp.concatenate([dist_a, dist_b], axis=-1)      # [TB, 2]

    # Per-batch-tile partial sums (of squares / abs); sqrt and /3 are done once
    # in the JAX epilogue.
    def row(v):
        return jnp.full((1, LANES), v, jnp.float32)

    stats_ref[0] = jnp.concatenate(
        [row(jnp.sum(jnp.abs(mask))),               # ||mask||_1 partial
         row(jnp.sum(emb[0] * emb[0])),             # ||E_x||_F^2 partial
         row(jnp.sum(emb[1] * emb[1])),
         row(jnp.sum(emb[2] * emb[2])),
         row(jnp.sum(memb[0] * memb[0])),           # ||M_x||_F^2 partial
         row(jnp.sum(memb[1] * memb[1])),
         row(jnp.sum(memb[2] * memb[2])),
         jnp.zeros((1, LANES), jnp.float32)], axis=0)               # [8, 128]


def triplet_csn_kernel(x_ref, y_ref, z_ref, w_ref, b_ref, mask_ref,
                       dist_ref, stats_ref, acc_ref=None, *,
                       d_valid, tf, w_is_full, single_k):
    """One (batch-tile i, K-tile k) grid step.

    x/y/z_ref: [TB, TF] f32   anchor / negative / positive tiles (cast to bf16 here)
    w_ref    : [F, Dp] or [TF, Dp] bf16  resident full weight or streamed K-tile
    b_ref    : [1, Dp]  f32   bias (resident across the whole grid)
    mask_ref : [TB, Dp] f32   gathered pre-relu condition masks (resident per i)
    dist_ref : [TB, 2]  f32   (dist_a | dist_b), written at the last K step
    stats_ref: [1, 8, 128] f32  per-batch-tile partial sums (last K step)
    acc_ref  : [3, TB, Dp] f32  matmul accumulator scratch (only when nk > 1)
    """
    k = pl.program_id(1)
    nk = pl.num_programs(1)

    if w_is_full:
        # Whole (padded, bf16) weight is resident in VMEM; slice out this K-tile.
        start = pl.multiple_of(k * tf, LANES) if tf % LANES == 0 else k * tf
        w = w_ref[pl.ds(start, tf), :]
    else:
        w = w_ref[...]

    imgs = (x_ref, y_ref, z_ref)

    if single_k:
        # nk == 1: no K streaming -> no VMEM accumulator round trip at all.
        emb = [jnp.dot(r[...].astype(jnp.bfloat16), w,
                       preferred_element_type=jnp.float32) + b_ref[...]
               for r in imgs]
        _finalize(emb, mask_ref, dist_ref, stats_ref, d_valid)
    else:
        @pl.when(k == 0)
        def _init():
            acc_ref[...] = jnp.zeros_like(acc_ref)

        # The three images share the weight K-tile; bf16 MXU, f32 accumulation.
        for s in range(3):
            acc_ref[s] = acc_ref[s] + jnp.dot(
                imgs[s][...].astype(jnp.bfloat16), w,
                preferred_element_type=jnp.float32)

        @pl.when(k == nk - 1)
        def _done():
            emb = [acc_ref[s] + b_ref[...] for s in range(3)]
            _finalize(emb, mask_ref, dist_ref, stats_ref, d_valid)


def prepare_params(params):
    """One-time parameter prep (call at model init, NOT per forward):
    pad the embedding dim D to a lane-dense width and cast the weight to bf16."""
    D = params["w"].shape[1]
    Dp = max(LANES, pl.cdiv(D, LANES) * LANES)
    w = jnp.pad(params["w"].astype(jnp.float32),
                ((0, 0), (0, Dp - D))).astype(jnp.bfloat16)            # [F, Dp]
    b = jnp.pad(params["b"].astype(jnp.float32).reshape(1, D),
                ((0, 0), (0, Dp - D)))                                  # [1, Dp]
    return {"w": w, "b": b, "masks": params["masks"].astype(jnp.float32),
            "d": D, "dp": Dp}


def triplet_net_forward(x, y, z, c, prep, *, block_b=512, block_f=1024,
                        w_resident_max_bytes=4 << 20):
    """TripletNet.forward.  x/y/z: [B, C, H, W] float, c: [B] int32,
    prep: output of prepare_params.

    Returns (dist_a [B], dist_b [B], mask_norm, embed_norm, mask_embed_norm).
    """
    B = x.shape[0]
    F_ = math.prod(x.shape[1:])
    D, Dp = prep["d"], prep["dp"]

    # --- host-side glue (all free views / tiny tensors) ----------------------
    x2d = x.reshape(B, F_)      # free reshapes; no extra HBM pass, no host cast
    y2d = y.reshape(B, F_)
    z2d = z.reshape(B, F_)
    # Embedding-table gather for the condition masks stays in JAX (tiny [B, D]).
    # TODO(synk): fold the gather into the kernel via PrefetchScalarGridSpec + pl.Element.
    mask = jnp.pad(jnp.take(prep["masks"], c, axis=0), ((0, 0), (0, Dp - D)))

    # --- tiling ---------------------------------------------------------------
    # Cap the batch tile at B/2 when B is large enough so the "parallel" axis
    # has >= 2 tiles (both v7x TensorCores get work); no-op on v5e/v6e.
    tb_target = block_b if B < 16 else min(block_b, B // 2)
    tb = _pick_tile(B, tb_target, 8)          # batch tile
    tf = _pick_tile(F_, block_f, LANES)       # reduction (lane-dense) tile
    nb, nk = B // tb, F_ // tf
    single_k = (nk == 1)

    # Keep the whole padded bf16 weight resident in VMEM when it is small
    # (DMA'd once for the whole grid); otherwise stream (tf, Dp) K-tiles.
    w_is_full = (F_ * Dp * 2) <= w_resident_max_bytes
    w_spec = (pl.BlockSpec((F_, Dp), lambda i, k: (0, 0)) if w_is_full
              else pl.BlockSpec((tf, Dp), lambda i, k: (k, 0)))

    grid_spec = pltpu.PrefetchScalarGridSpec(
        num_scalar_prefetch=0,
        grid=(nb, nk),
        in_specs=[
            pl.BlockSpec((tb, tf), lambda i, k: (i, k)),      # x
            pl.BlockSpec((tb, tf), lambda i, k: (i, k)),      # y
            pl.BlockSpec((tb, tf), lambda i, k: (i, k)),      # z
            w_spec,                                           # weight
            pl.BlockSpec((1, Dp), lambda i, k: (0, 0)),       # bias (resident)
            pl.BlockSpec((tb, Dp), lambda i, k: (i, 0)),      # mask (resident per i)
        ],
        out_specs=(
            pl.BlockSpec((tb, 2), lambda i, k: (i, 0)),       # dist_a | dist_b
            pl.BlockSpec((1, 8, LANES), lambda i, k: (i, 0, 0)),   # partial stats
        ),
        scratch_shapes=([] if single_k
                        else [pltpu.VMEM((3, tb, Dp), jnp.float32)]),
    )

    dist, stats = pl.pallas_call(
        functools.partial(triplet_csn_kernel, d_valid=D, tf=tf,
                          w_is_full=w_is_full, single_k=single_k),
        out_shape=(
            jax.ShapeDtypeStruct((B, 2), jnp.float32),
            jax.ShapeDtypeStruct((nb, 8, LANES), jnp.float32),
        ),
        grid_spec=grid_spec,
        compiler_params=pltpu.CompilerParams(
            dimension_semantics=("parallel", "arbitrary")),
    )(x2d, y2d, z2d, prep["w"], prep["b"], mask)

    # Tiny epilogue: reduce partial sums over batch tiles, sqrt once, average.
    s = stats[:, :, 0]                                   # [nb, 8]
    mask_norm = jnp.sum(s[:, 0])                         # same mask for x/y/z
    embed_norm = (jnp.sqrt(jnp.sum(s[:, 1])) + jnp.sqrt(jnp.sum(s[:, 2]))
                  + jnp.sqrt(jnp.sum(s[:, 3]))) / 3.0
    mask_embed_norm = (jnp.sqrt(jnp.sum(s[:, 4])) + jnp.sqrt(jnp.sum(s[:, 5]))
                       + jnp.sqrt(jnp.sum(s[:, 6]))) / 3.0
    return dist[:, 0], dist[:, 1], mask_norm, embed_norm, mask_embed_norm


def _reference_forward(x, y, z, c, params, *, bf16_operands=False):
    """Pure-JAX reference (optionally with the matmul operands rounded to bf16
    to mirror the kernel's MXU dtype)."""
    B = x.shape[0]
    F_ = math.prod(x.shape[1:])
    w = params["w"].astype(jnp.float32)
    b = params["b"].reshape(1, -1).astype(jnp.float32)
    if bf16_operands:
        w = w.astype(jnp.bfloat16).astype(jnp.float32)
    mask = jnp.maximum(jnp.take(params["masks"], c, axis=0), 0.0)

    def csn(img):
        a = img.reshape(B, F_).astype(jnp.float32)
        if bf16_operands:
            a = a.astype(jnp.bfloat16).astype(jnp.float32)
        emb = a @ w + b
        masked = emb * mask
        return (masked, jnp.sum(jnp.abs(mask)),
                jnp.linalg.norm(emb), jnp.linalg.norm(masked))

    mx, mnx, enx, tnx = csn(x)
    my, mny, eny, tny = csn(y)
    mz, mnz, enz, tnz = csn(z)
    da = jnp.sqrt(jnp.sum((mx - my + EPS_PAIRWISE) ** 2, axis=1))
    db = jnp.sqrt(jnp.sum((mx - mz + EPS_PAIRWISE) ** 2, axis=1))
    return (da, db, (mnx + mny + mnz) / 3, (enx + eny + enz) / 3,
            (tnx + tny + tnz) / 3)


if __name__ == "__main__":
    B, C, H, W = 2, 4, 16, 16
    D = 32            # embedding size
    N_COND = 4        # number of similarity conditions
    F_ = C * H * W    # 1024

    key = jax.random.PRNGKey(0)
    kx, ky, kz, kw, km, kc = jax.random.split(key, 6)

    x = jax.random.normal(kx, (B, C, H, W), jnp.float32)
    y = jax.random.normal(ky, (B, C, H, W), jnp.float32)
    z = jax.random.normal(kz, (B, C, H, W), jnp.float32)
    c = jax.random.randint(kc, (B,), 0, N_COND, jnp.int32)

    params = {
        "w": 0.02 * jax.random.normal(kw, (F_, D), jnp.float32),
        "b": jnp.zeros((1, D), jnp.float32),
        "masks": jax.random.normal(km, (N_COND, D), jnp.float32),
    }
    prep = prepare_params(params)   # one-time param prep (pad + bf16 cast)

    ref_bf16 = _reference_forward(x, y, z, c, params, bf16_operands=True)
    ref_f32 = _reference_forward(x, y, z, c, params)

    # Three configs to cover every kernel path:
    #   1) defaults           -> single-K step, VMEM-resident weight
    #   2) block_f=256        -> K-streamed accumulation, resident weight (dyn slice)
    #   3) block_f=256, w_resident_max_bytes=0 -> K-streamed accumulation + streamed weight
    configs = ({}, {"block_f": 256}, {"block_f": 256, "w_resident_max_bytes": 0})
    for kwargs in configs:
        out = jax.block_until_ready(
            triplet_net_forward(x, y, z, c, prep, **kwargs))
        # Tight check vs a bf16-operand reference, loose check vs the f32
        # reference (the bf16 matmul-operand cast is the only intended deviation).
        for o, r16, r32 in zip(out, ref_bf16, ref_f32):
            assert jnp.allclose(o, r16, rtol=2e-3, atol=2e-3), (kwargs, o, r16)
            assert jnp.allclose(o, r32, rtol=3e-2, atol=3e-2), (kwargs, o, r32)

    print("KERNEL_OK")
</pallas_src>

<mosaic_0001>
module attributes {stable_mosaic.version = 11 : i64} {
  func.func @triplet_csn_kernel(%arg0: i32, %arg1: i32, %arg2: memref<2x1024xf32, #tpu.memory_space<vmem>>, %arg3: memref<2x1024xf32, #tpu.memory_space<vmem>>, %arg4: memref<2x1024xf32, #tpu.memory_space<vmem>>, %arg5: memref<1024x128xbf16, #tpu.memory_space<vmem>>, %arg6: memref<1x128xf32, #tpu.memory_space<vmem>>, %arg7: memref<2x128xf32, #tpu.memory_space<vmem>>, %arg8: memref<2x2xf32, #tpu.memory_space<vmem>>, %arg9: memref<1x8x128xf32, #tpu.memory_space<vmem>>) attributes {dimension_semantics = [#tpu.dimension_semantics<parallel>, #tpu.dimension_semantics<arbitrary>], iteration_bounds = array<i64: 1, 1>, scalar_prefetch = 0 : i64, scratch_operands = 0 : i64, tpu.core_type = #tpu.core_type<tc>, window_params = [{transform_indices = @transform_0, window_bounds = array<i64: 2, 1024>}, {transform_indices = @transform_1, window_bounds = array<i64: 2, 1024>}, {transform_indices = @transform_2, window_bounds = array<i64: 2, 1024>}, {pipeline_mode = #tpu.pipeline_mode<synchronous>, transform_indices = @transform_3, window_bounds = array<i64: 1024, 128>}, {pipeline_mode = #tpu.pipeline_mode<synchronous>, transform_indices = @transform_4, window_bounds = array<i64: 1, 128>}, {transform_indices = @transform_5, window_bounds = array<i64: 2, 128>}, {transform_indices = @transform_6, window_bounds = array<i64: 2, 2>}, {transform_indices = @transform_7, window_bounds = array<i64: 1, 8, 128>}]} {
    %c1024_i32 = arith.constant 1024 : i32
    %0 = arith.muli %arg1, %c1024_i32 : i32
    %1 = tpu.assume_multiple %0, 128 : i32
    %2 = arith.index_cast %1 : i32 to index
    %c0 = arith.constant 0 : index
    %3 = vector.load %arg5[%2, %c0] : memref<1024x128xbf16, #tpu.memory_space<vmem>>, vector<1024x128xbf16>
    %c0_0 = arith.constant 0 : index
    %c0_1 = arith.constant 0 : index
    %4 = vector.load %arg2[%c0_0, %c0_1] : memref<2x1024xf32, #tpu.memory_space<vmem>>, vector<2x1024xf32>
    %5 = arith.truncf %4 : vector<2x1024xf32> to vector<2x1024xbf16>
    %cst = arith.constant dense<0.000000e+00> : vector<2x128xf32>
    %6 = tpu.matmul %5, %3, %cst {dimension_numbers = #tpu.dot_dimension_numbers<[1], [0], [0], [1], [0, 0, 1, 1], [], []>} : vector<2x1024xbf16>, vector<1024x128xbf16>, vector<2x128xf32> -> vector<2x128xf32>
    %c0_2 = arith.constant 0 : index
    %c0_3 = arith.constant 0 : index
    %7 = vector.load %arg6[%c0_2, %c0_3] : memref<1x128xf32, #tpu.memory_space<vmem>>, vector<1x128xf32>
    %8 = vector.broadcast %7 : vector<1x128xf32> to vector<2x128xf32>
    %9 = arith.addf %6, %8 : vector<2x128xf32>
    %c0_4 = arith.constant 0 : index
    %c0_5 = arith.constant 0 : index
    %10 = vector.load %arg3[%c0_4, %c0_5] : memref<2x1024xf32, #tpu.memory_space<vmem>>, vector<2x1024xf32>
    %11 = arith.truncf %10 : vector<2x1024xf32> to vector<2x1024xbf16>
    %cst_6 = arith.constant dense<0.000000e+00> : vector<2x128xf32>
    %12 = tpu.matmul %11, %3, %cst_6 {dimension_numbers = #tpu.dot_dimension_numbers<[1], [0], [0], [1], [0, 0, 1, 1], [], []>} : vector<2x1024xbf16>, vector<1024x128xbf16>, vector<2x128xf32> -> vector<2x128xf32>
    %c0_7 = arith.constant 0 : index
    %c0_8 = arith.constant 0 : index
    %13 = vector.load %arg6[%c0_7, %c0_8] : memref<1x128xf32, #tpu.memory_space<vmem>>, vector<1x128xf32>
    %14 = vector.broadcast %13 : vector<1x128xf32> to vector<2x128xf32>
    %15 = arith.addf %12, %14 : vector<2x128xf32>
    %c0_9 = arith.constant 0 : index
    %c0_10 = arith.constant 0 : index
    %16 = vector.load %arg4[%c0_9, %c0_10] : memref<2x1024xf32, #tpu.memory_space<vmem>>, vector<2x1024xf32>
    %17 = arith.truncf %16 : vector<2x1024xf32> to vector<2x1024xbf16>
    %cst_11 = arith.constant dense<0.000000e+00> : vector<2x128xf32>
    %18 = tpu.matmul %17, %3, %cst_11 {dimension_numbers = #tpu.dot_dimension_numbers<[1], [0], [0], [1], [0, 0, 1, 1], [], []>} : vector<2x1024xbf16>, vector<1024x128xbf16>, vector<2x128xf32> -> vector<2x128xf32>
    %c0_12 = arith.constant 0 : index
    %c0_13 = arith.constant 0 : index
    %19 = vector.load %arg6[%c0_12, %c0_13] : memref<1x128xf32, #tpu.memory_space<vmem>>, vector<1x128xf32>
    %20 = vector.broadcast %19 : vector<1x128xf32> to vector<2x128xf32>
    %21 = arith.addf %18, %20 : vector<2x128xf32>
    %c0_14 = arith.constant 0 : index
    %c0_15 = arith.constant 0 : index
    %22 = vector.load %arg7[%c0_14, %c0_15] : memref<2x128xf32, #tpu.memory_space<vmem>>, vector<2x128xf32>
    %cst_16 = arith.constant 0.000000e+00 : f32
    %23 = vector.broadcast %cst_16 : f32 to vector<2x128xf32>
    %24 = arith.maximumf %22, %23 : vector<2x128xf32>
    %25 = arith.mulf %9, %24 : vector<2x128xf32>
    %26 = arith.mulf %15, %24 : vector<2x128xf32>
    %27 = arith.mulf %21, %24 : vector<2x128xf32>
    %28 = tpu.iota {dimensions = array<i32: 1>} : vector<1x128xi32>
    %c32_i32 = arith.constant 32 : i32
    %29 = vector.broadcast %c32_i32 : i32 to vector<1x128xi32>
    %30 = arith.cmpi slt, %28, %29 : vector<1x128xi32>
    %cst_17 = arith.constant 9.99999997E-7 : f32
    %cst_18 = arith.constant 0.000000e+00 : f32
    %31 = vector.broadcast %cst_17 : f32 to vector<1x128xf32>
    %32 = vector.broadcast %cst_18 : f32 to vector<1x128xf32>
    %33 = arith.select %30, %31, %32 : vector<1x128xi1>, vector<1x128xf32>
    %34 = arith.subf %25, %26 : vector<2x128xf32>
    %35 = vector.broadcast %33 : vector<1x128xf32> to vector<2x128xf32>
    %36 = arith.addf %34, %35 : vector<2x128xf32>
    %37 = arith.subf %25, %27 : vector<2x128xf32>
    %38 = vector.broadcast %33 : vector<1x128xf32> to vector<2x128xf32>
    %39 = arith.addf %37, %38 : vector<2x128xf32>
    %40 = arith.mulf %36, %36 : vector<2x128xf32>
    %cst_19 = arith.constant dense<0.000000e+00> : vector<2xf32>
    %41 = vector.multi_reduction <add>, %40, %cst_19 [1] : vector<2x128xf32> to vector<2xf32>
    %42 = vector.shape_cast %41 : vector<2xf32> to vector<2x1xf32>
    %43 = math.sqrt %42 : vector<2x1xf32>
    %44 = arith.mulf %39, %39 : vector<2x128xf32>
    %cst_20 = arith.constant dense<0.000000e+00> : vector<2xf32>
    %45 = vector.multi_reduction <add>, %44, %cst_20 [1] : vector<2x128xf32> to vector<2xf32>
    %46 = vector.shape_cast %45 : vector<2xf32> to vector<2x1xf32>
    %47 = math.sqrt %46 : vector<2x1xf32>
    %48 = tpu.concatenate %43, %47 in 1 : vector<2x1xf32>, vector<2x1xf32> -> vector<2x2xf32>
    %c0_21 = arith.constant 0 : index
    %c0_22 = arith.constant 0 : index
    %49 = vector.load %arg8[%c0_21, %c0_22] : memref<2x2xf32, #tpu.memory_space<vmem>>, vector<2x2xf32>
    tpu.vector_store %arg8[%c0_21, %c0_22], %48 {strides = array<i32>} : memref<2x2xf32, #tpu.memory_space<vmem>>, vector<2x2xf32>,
    %50 = math.absf %24 : vector<2x128xf32>
    %51 = vector.shape_cast %50 : vector<2x128xf32> to vector<1x2x128xf32>
    %cst_23 = arith.constant dense<0.000000e+00> : vector<1xf32>
    %52 = vector.multi_reduction <add>, %51, %cst_23 [1, 2] : vector<1x2x128xf32> to vector<1xf32>
    %53 = vector.shape_cast %52 : vector<1xf32> to vector<1x1x1xf32>
    %54 = vector.extract %53[0, 0, 0] : f32 from vector<1x1x1xf32>
    %55 = vector.broadcast %54 : f32 to vector<1x128xf32>
    %56 = arith.mulf %9, %9 : vector<2x128xf32>
    %57 = vector.shape_cast %56 : vector<2x128xf32> to vector<1x2x128xf32>
    %cst_24 = arith.constant dense<0.000000e+00> : vector<1xf32>
    %58 = vector.multi_reduction <add>, %57, %cst_24 [1, 2] : vector<1x2x128xf32> to vector<1xf32>
    %59 = vector.shape_cast %58 : vector<1xf32> to vector<1x1x1xf32>
    %60 = vector.extract %59[0, 0, 0] : f32 from vector<1x1x1xf32>
    %61 = vector.broadcast %60 : f32 to vector<1x128xf32>
    %62 = arith.mulf %15, %15 : vector<2x128xf32>
    %63 = vector.shape_cast %62 : vector<2x128xf32> to vector<1x2x128xf32>
    %cst_25 = arith.constant dense<0.000000e+00> : vector<1xf32>
    %64 = vector.multi_reduction <add>, %63, %cst_25 [1, 2] : vector<1x2x128xf32> to vector<1xf32>
    %65 = vector.shape_cast %64 : vector<1xf32> to vector<1x1x1xf32>
    %66 = vector.extract %65[0, 0, 0] : f32 from vector<1x1x1xf32>
    %67 = vector.broadcast %66 : f32 to vector<1x128xf32>
    %68 = arith.mulf %21, %21 : vector<2x128xf32>
    %69 = vector.shape_cast %68 : vector<2x128xf32> to vector<1x2x128xf32>
    %cst_26 = arith.constant dense<0.000000e+00> : vector<1xf32>
    %70 = vector.multi_reduction <add>, %69, %cst_26 [1, 2] : vector<1x2x128xf32> to vector<1xf32>
    %71 = vector.shape_cast %70 : vector<1xf32> to vector<1x1x1xf32>
    %72 = vector.extract %71[0, 0, 0] : f32 from vector<1x1x1xf32>
    %73 = vector.broadcast %72 : f32 to vector<1x128xf32>
    %74 = arith.mulf %25, %25 : vector<2x128xf32>
    %75 = vector.shape_cast %74 : vector<2x128xf32> to vector<1x2x128xf32>
    %cst_27 = arith.constant dense<0.000000e+00> : vector<1xf32>
    %76 = vector.multi_reduction <add>, %75, %cst_27 [1, 2] : vector<1x2x128xf32> to vector<1xf32>
    %77 = vector.shape_cast %76 : vector<1xf32> to vector<1x1x1xf32>
    %78 = vector.extract %77[0, 0, 0] : f32 from vector<1x1x1xf32>
    %79 = vector.broadcast %78 : f32 to vector<1x128xf32>
    %80 = arith.mulf %26, %26 : vector<2x128xf32>
    %81 = vector.shape_cast %80 : vector<2x128xf32> to vector<1x2x128xf32>
    %cst_28 = arith.constant dense<0.000000e+00> : vector<1xf32>
    %82 = vector.multi_reduction <add>, %81, %cst_28 [1, 2] : vector<1x2x128xf32> to vector<1xf32>
    %83 = vector.shape_cast %82 : vector<1xf32> to vector<1x1x1xf32>
    %84 = vector.extract %83[0, 0, 0] : f32 from vector<1x1x1xf32>
    %85 = vector.broadcast %84 : f32 to vector<1x128xf32>
    %86 = arith.mulf %27, %27 : vector<2x128xf32>
    %87 = vector.shape_cast %86 : vector<2x128xf32> to vector<1x2x128xf32>
    %cst_29 = arith.constant dense<0.000000e+00> : vector<1xf32>
    %88 = vector.multi_reduction <add>, %87, %cst_29 [1, 2] : vector<1x2x128xf32> to vector<1xf32>
    %89 = vector.shape_cast %88 : vector<1xf32> to vector<1x1x1xf32>
    %90 = vector.extract %89[0, 0, 0] : f32 from vector<1x1x1xf32>
    %91 = vector.broadcast %90 : f32 to vector<1x128xf32>
    %cst_30 = arith.constant 0.000000e+00 : f32
    %92 = vector.broadcast %cst_30 : f32 to vector<1x128xf32>
    %93 = tpu.concatenate %55, %61, %67, %73, %79, %85, %91, %92 in 0 : vector<1x128xf32>, vector<1x128xf32>, vector<1x128xf32>, vector<1x128xf32>, vector<1x128xf32>, vector<1x128xf32>, vector<1x128xf32>, vector<1x128xf32> -> vector<8x128xf32>
    %c0_31 = arith.constant 0 : index
    %c0_32 = arith.constant 0 : index
    %c0_33 = arith.constant 0 : index
    %94 = vector.load %arg9[%c0_31, %c0_32, %c0_33] : memref<1x8x128xf32, #tpu.memory_space<vmem>>, vector<1x8x128xf32>
    %95 = vector.shape_cast %94 : vector<1x8x128xf32> to vector<8x128xf32>
    %96 = vector.shape_cast %93 : vector<8x128xf32> to vector<1x8x128xf32>
    tpu.vector_store %arg9[%c0_31, %c0_32, %c0_33], %96 {strides = array<i32>} : memref<1x8x128xf32, #tpu.memory_space<vmem>>, vector<1x8x128xf32>,
    return
  }
  func.func @transform_0(%arg0: i32, %arg1: i32) -> (i32, i32) {
    %c0_i32 = arith.constant 0 : i32
    return %arg0, %arg1 : i32, i32
  }
  func.func @transform_1(%arg0: i32, %arg1: i32) -> (i32, i32) {
    %c0_i32 = arith.constant 0 : i32
    return %arg0, %arg1 : i32, i32
  }
  func.func @transform_2(%arg0: i32, %arg1: i32) -> (i32, i32) {
    %c0_i32 = arith.constant 0 : i32
    return %arg0, %arg1 : i32, i32
  }
  func.func @transform_3(%arg0: i32, %arg1: i32) -> (i32, i32) {
    %c0_i32 = arith.constant 0 : i32
    %c0_i32_0 = arith.constant 0 : i32
    %c0_i32_1 = arith.constant 0 : i32
    return %c0_i32, %c0_i32_0 : i32, i32
  }
  func.func @transform_4(%arg0: i32, %arg1: i32) -> (i32, i32) {
    %c0_i32 = arith.constant 0 : i32
    %c0_i32_0 = arith.constant 0 : i32
    %c0_i32_1 = arith.constant 0 : i32
    return %c0_i32, %c0_i32_0 : i32, i32
  }
  func.func @transform_5(%arg0: i32, %arg1: i32) -> (i32, i32) {
    %c0_i32 = arith.constant 0 : i32
    %c0_i32_0 = arith.constant 0 : i32
    return %arg0, %c0_i32 : i32, i32
  }
  func.func @transform_6(%arg0: i32, %arg1: i32) -> (i32, i32) {
    %c0_i32 = arith.constant 0 : i32
    %c0_i32_0 = arith.constant 0 : i32
    return %arg0, %c0_i32 : i32, i32
  }
  func.func @transform_7(%arg0: i32, %arg1: i32) -> (i32, i32, i32) {
    %c0_i32 = arith.constant 0 : i32
    %c0_i32_0 = arith.constant 0 : i32
    %c0_i32_1 = arith.constant 0 : i32
    return %arg0, %c0_i32, %c0_i32_0 : i32, i32, i32
  }
}

</mosaic_0001>

<llo_original>
// kernel: tpu_custom_call.1
$region0: #{tpu_custom_call.1}
  #allocation0 [shape = 'u32[]', space=smem, size = 0x4, offset = 0x4, fixed_abs, tag = 'smem constant byte address 0x4 - core index']
  #allocation1 [shape = 'u32[144,128]{1,0:T(1,128)}', space=vmem, size = 0x12000, scoped, tag = 'internal scratch']
  %s0 = inlined_call_operand.hbm [shape: f32[2,1024], index: 0, kind: input, shape index: {}]
  %s1 = inlined_call_operand.hbm [shape: f32[2,1024], index: 1, kind: input, shape index: {}]
  %s2 = inlined_call_operand.hbm [shape: f32[2,1024], index: 2, kind: input, shape index: {}]
  %s3 = inlined_call_operand.hbm [shape: bf16[1024,128], index: 3, kind: input, shape index: {}]
  %s4 = inlined_call_operand.vmem [shape: f32[1,128], index: 4, kind: input, shape index: {}]
  %s5 = inlined_call_operand.vmem [shape: f32[2,128], index: 5, kind: input, shape index: {}]
  %s6 = inlined_call_operand.hbm [shape: f32[2,2], index: 6, kind: output, shape index: {0}]
  %s7 = inlined_call_operand.hbm [shape: f32[1,8,128], index: 7, kind: output, shape index: {1}]
  %8 = xla_tuple %s6, %s7
  %s9 = sld [smem:[#allocation0]]
  $region58: #{tpu_custom_call.1} parent=0
    _
  %s11 = ssub.s32 1, %s9
  %s12 = scalar_select 0, %s11, %s9
  $region1: #{tpu_custom_call.1} parent=0
    #allocation2 [shape = 'u8[8192]{0}', space=vmem, size = 0x2000, scoped, tag = 'input window, operand 0, single buffered']
    #allocation3 [shape = 's32[1]{0}', space=sflag, size = 0x4, scoped, tag = 'scoped memory for tpu_custom_call.1']
    #allocation4 [shape = 's32[1]{0}', space=sflag, size = 0x4, scoped, tag = 'scoped memory for tpu_custom_call.1']
    #allocation5 [shape = 'u8[8192]{0}', space=vmem, size = 0x2000, scoped, tag = 'input window, operand 1, single buffered']
    #allocation6 [shape = 's32[1]{0}', space=sflag, size = 0x4, scoped, tag = 'scoped memory for tpu_custom_call.1']
    #allocation7 [shape = 'u8[8192]{0}', space=vmem, size = 0x2000, scoped, tag = 'input window, operand 2, single buffered']
    #allocation8 [shape = 'u8[262144]{0}', space=vmem, size = 0x40000, scoped, tag = 'input window, operand 3, single buffered']
    #allocation9 [shape = 's32[1]{0}', space=sflag, size = 0x4, scoped, tag = 'scoped memory for tpu_custom_call.1']
    #allocation10 [shape = 'u8[1024]{0}', space=vmem, size = 0x400, scoped, tag = 'output window, operand 0, single buffered']
    #allocation11 [shape = 'u8[4096]{0}', space=vmem, size = 0x1000, scoped, tag = 'output window, operand 1, single buffered']
    #allocation12 [shape = 's32[1]{0}', space=sflag, size = 0x4, scoped, tag = 'scoped memory for tpu_custom_call.1']
    %13 = vsyncpa [#allocation3], 0
    %14 = vsyncpa [#allocation6], 0
    %15 = vsyncpa [#allocation9], 0
    %16 = vsyncpa [#allocation4], 0
    %17 = vsyncpa [#allocation12], 0
    // Predicated region
    $region2: #{tpu_custom_call.1} parent=1 // pred_check
      _
    $region3: #{tpu_custom_call.1} parent=1 // pred_check_branch
      %19 = sbr.rel (0) target = $region5
    $region4: #{tpu_custom_call.1} parent=1 // pred_region
      %s21 = ssub.s32 256, 256
      %22 = vsyncadd [#allocation3], %s21
      %s24 = sshll.u32 [#allocation2], 4
      %s25 = int_to_ptr.vmem [resolvable:$true] %s24
      %27 = dma.hbm_to_vmem [thread:$0]  %s0, 256, %s25, [#allocation3]
    $region5: #{tpu_custom_call.1} parent=1 // pred_fallthru
      _
    // Predicated region
    $region6: #{tpu_custom_call.1} parent=1 // pred_check
      _
    $region7: #{tpu_custom_call.1} parent=1 // pred_check_branch
      %29 = sbr.rel (0) target = $region9
    $region8: #{tpu_custom_call.1} parent=1 // pred_region
      %s31 = ssub.s32 256, 256
      %32 = vsyncadd [#allocation6], %s31
      %s34 = sshll.u32 [#allocation5], 4
      %s35 = int_to_ptr.vmem [resolvable:$true] %s34
      %37 = dma.hbm_to_vmem [thread:$0]  %s1, 256, %s35, [#allocation6]
    $region9: #{tpu_custom_call.1} parent=1 // pred_fallthru
      _
    // Predicated region
    $region10: #{tpu_custom_call.1} parent=1 // pred_check
      _
    $region11: #{tpu_custom_call.1} parent=1 // pred_check_branch
      %39 = sbr.rel (0) target = $region13
    $region12: #{tpu_custom_call.1} parent=1 // pred_region
      %s41 = ssub.s32 256, 256
      %42 = vsyncadd [#allocation6], %s41
      %s44 = sshll.u32 [#allocation7], 4
      %s45 = int_to_ptr.vmem [resolvable:$true] %s44
      %47 = dma.hbm_to_vmem [thread:$0]  %s2, 256, %s45, [#allocation6]
    $region13: #{tpu_custom_call.1} parent=1 // pred_fallthru
      _
    // Predicated region
    $region14: #{tpu_custom_call.1} parent=1 // pred_check
      _
    $region15: #{tpu_custom_call.1} parent=1 // pred_check_branch
      %49 = sbr.rel (0) target = $region17
    $region16: #{tpu_custom_call.1} parent=1 // pred_region
      %s51 = ssub.s32 8192, 8192
      %52 = vsyncadd [#allocation9], %s51
      %s53 = sshll.u32 [#allocation8], 4
      %s54 = int_to_ptr.vmem [resolvable:$true] %s53
      %59 = dma.hbm_to_vmem [thread:$0]  %s3, 8192, %s54, [#allocation9], 64, 64, 4
    $region17: #{tpu_custom_call.1} parent=1 // pred_fallthru
      _
    // Predicated region
    $region18: #{tpu_custom_call.1} parent=1 // pred_check
      _
    $region19: #{tpu_custom_call.1} parent=1 // pred_check_branch
      %61 = sbr.rel (0) target = $region21
    $region20: #{tpu_custom_call.1} parent=1 // pred_region
      _
    $region21: #{tpu_custom_call.1} parent=1 // pred_fallthru
      _
    // Predicated region
    $region22: #{tpu_custom_call.1} parent=1 // pred_check
      _
    $region23: #{tpu_custom_call.1} parent=1 // pred_check_branch
      %63 = sbr.rel (0) target = $region25
    $region24: #{tpu_custom_call.1} parent=1 // pred_region
      _
    $region25: #{tpu_custom_call.1} parent=1 // pred_fallthru
      _
    // Predicated region
    $region26: #{tpu_custom_call.1} parent=1 // pred_check
      _
    $region27: #{tpu_custom_call.1} parent=1 // pred_check_branch
      %65 = sbr.rel (0) target = $region29
    $region28: #{tpu_custom_call.1} parent=1 // pred_region
      %66 = dma.done [#allocation3], 256
    $region29: #{tpu_custom_call.1} parent=1 // pred_fallthru
      _
    // Predicated region
    $region30: #{tpu_custom_call.1} parent=1 // pred_check
      _
    $region31: #{tpu_custom_call.1} parent=1 // pred_check_branch
      %68 = sbr.rel (0) target = $region33
    $region32: #{tpu_custom_call.1} parent=1 // pred_region
      %69 = dma.done [#allocation6], 256
    $region33: #{tpu_custom_call.1} parent=1 // pred_fallthru
      _
    // Predicated region
    $region34: #{tpu_custom_call.1} parent=1 // pred_check
      _
    $region35: #{tpu_custom_call.1} parent=1 // pred_check_branch
      %71 = sbr.rel (0) target = $region37
    $region36: #{tpu_custom_call.1} parent=1 // pred_region
      %72 = dma.done [#allocation6], 256
    $region37: #{tpu_custom_call.1} parent=1 // pred_fallthru
      _
    // Predicated region
    $region38: #{tpu_custom_call.1} parent=1 // pred_check
      _
    $region39: #{tpu_custom_call.1} parent=1 // pred_check_branch
      %74 = sbr.rel (0) target = $region41
    $region40: #{tpu_custom_call.1} parent=1 // pred_region
      %75 = dma.done [#allocation9], 8192
    $region41: #{tpu_custom_call.1} parent=1 // pred_fallthru
      _
    %s77 = smul.u32 0, 1024
    %s78 = sshra.s32 %s77, 3
    %s79 = sand.u32 %s77, 7
    %s80 = smul.addr %s78, 4
    %s81 = scalar_lea.vmem [#allocation8], %s80
    %v82 = vld [vmem:[%s81] sm:$0xf]
    %v83 = vld [vmem:[%s81 + $0x4] sm:$0xf]
    %v84 = vld [vmem:[%s81 + $0x8] sm:$0xf]
    %v85 = vld [vmem:[%s81 + $0xc] sm:$0xf]
    %v86 = vld [vmem:[%s81 + $0x10] sm:$0xf]
    %v87 = vld [vmem:[%s81 + $0x14] sm:$0xf]
    %v88 = vld [vmem:[%s81 + $0x18] sm:$0xf]
    %v89 = vld [vmem:[%s81 + $0x1c] sm:$0xf]
    %v90 = vld [vmem:[%s81 + $0x20] sm:$0xf]
    %v91 = vld [vmem:[%s81 + $0x24] sm:$0xf]
    %v92 = vld [vmem:[%s81 + $0x28] sm:$0xf]
    %v93 = vld [vmem:[%s81 + $0x2c] sm:$0xf]
    %v94 = vld [vmem:[%s81 + $0x30] sm:$0xf]
    %v95 = vld [vmem:[%s81 + $0x34] sm:$0xf]
    %v96 = vld [vmem:[%s81 + $0x38] sm:$0xf]
    %v97 = vld [vmem:[%s81 + $0x3c] sm:$0xf]
    %v98 = vld [vmem:[%s81 + $0x40] sm:$0xf]
    %v99 = vld [vmem:[%s81 + $0x44] sm:$0xf]
    %v100 = vld [vmem:[%s81 + $0x48] sm:$0xf]
    %v101 = vld [vmem:[%s81 + $0x4c] sm:$0xf]
    %v102 = vld [vmem:[%s81 + $0x50] sm:$0xf]
    %v103 = vld [vmem:[%s81 + $0x54] sm:$0xf]
    %v104 = vld [vmem:[%s81 + $0x58] sm:$0xf]
    %v105 = vld [vmem:[%s81 + $0x5c] sm:$0xf]
    %v106 = vld [vmem:[%s81 + $0x60] sm:$0xf]
    %v107 = vld [vmem:[%s81 + $0x64] sm:$0xf]
    %v108 = vld [vmem:[%s81 + $0x68] sm:$0xf]
    %v109 = vld [vmem:[%s81 + $0x6c] sm:$0xf]
    %v110 = vld [vmem:[%s81 + $0x70] sm:$0xf]
    %v111 = vld [vmem:[%s81 + $0x74] sm:$0xf]
    %v112 = vld [vmem:[%s81 + $0x78] sm:$0xf]
    %v113 = vld [vmem:[%s81 + $0x7c] sm:$0xf]
    %v114 = vld [vmem:[%s81 + $0x80] sm:$0xf]
    %v115 = vld [vmem:[%s81 + $0x84] sm:$0xf]
    %v116 = vld [vmem:[%s81 + $0x88] sm:$0xf]
    %v117 = vld [vmem:[%s81 + $0x8c] sm:$0xf]
    %v118 = vld [vmem:[%s81 + $0x90] sm:$0xf]
    %v119 = vld [vmem:[%s81 + $0x94] sm:$0xf]
    %v120 = vld [vmem:[%s81 + $0x98] sm:$0xf]
    %v121 = vld [vmem:[%s81 + $0x9c] sm:$0xf]
    %v122 = vld [vmem:[%s81 + $0xa0] sm:$0xf]
    %v123 = vld [vmem:[%s81 + $0xa4] sm:$0xf]
    %v124 = vld [vmem:[%s81 + $0xa8] sm:$0xf]
    %v125 = vld [vmem:[%s81 + $0xac] sm:$0xf]
    %v126 = vld [vmem:[%s81 + $0xb0] sm:$0xf]
    %v127 = vld [vmem:[%s81 + $0xb4] sm:$0xf]
    %v128 = vld [vmem:[%s81 + $0xb8] sm:$0xf]
    %v129 = vld [vmem:[%s81 + $0xbc] sm:$0xf]
    %v130 = vld [vmem:[%s81 + $0xc0] sm:$0xf]
    %v131 = vld [vmem:[%s81 + $0xc4] sm:$0xf]
    %v132 = vld [vmem:[%s81 + $0xc8] sm:$0xf]
    %v133 = vld [vmem:[%s81 + $0xcc] sm:$0xf]
    %v134 = vld [vmem:[%s81 + $0xd0] sm:$0xf]
    %v135 = vld [vmem:[%s81 + $0xd4] sm:$0xf]
    %v136 = vld [vmem:[%s81 + $0xd8] sm:$0xf]
    %v137 = vld [vmem:[%s81 + $0xdc] sm:$0xf]
    %v138 = vld [vmem:[%s81 + $0xe0] sm:$0xf]
    %v139 = vld [vmem:[%s81 + $0xe4] sm:$0xf]
    %v140 = vld [vmem:[%s81 + $0xe8] sm:$0xf]
    %v141 = vld [vmem:[%s81 + $0xec] sm:$0xf]
    %v142 = vld [vmem:[%s81 + $0xf0] sm:$0xf]
    %v143 = vld [vmem:[%s81 + $0xf4] sm:$0xf]
    %v144 = vld [vmem:[%s81 + $0xf8] sm:$0xf]
    %v145 = vld [vmem:[%s81 + $0xfc] sm:$0xf]
    %v146 = vld [vmem:[%s81 + $0x100] sm:$0xf]
    %v147 = vld [vmem:[%s81 + $0x104] sm:$0xf]
    %v148 = vld [vmem:[%s81 + $0x108] sm:$0xf]
    %v149 = vld [vmem:[%s81 + $0x10c] sm:$0xf]
    %v150 = vld [vmem:[%s81 + $0x110] sm:$0xf]
    %v151 = vld [vmem:[%s81 + $0x114] sm:$0xf]
    %v152 = vld [vmem:[%s81 + $0x118] sm:$0xf]
    %v153 = vld [vmem:[%s81 + $0x11c] sm:$0xf]
    %v154 = vld [vmem:[%s81 + $0x120] sm:$0xf]
    %v155 = vld [vmem:[%s81 + $0x124] sm:$0xf]
    %v156 = vld [vmem:[%s81 + $0x128] sm:$0xf]
    %v157 = vld [vmem:[%s81 + $0x12c] sm:$0xf]
    %v158 = vld [vmem:[%s81 + $0x130] sm:$0xf]
    %v159 = vld [vmem:[%s81 + $0x134] sm:$0xf]
    %v160 = vld [vmem:[%s81 + $0x138] sm:$0xf]
    %v161 = vld [vmem:[%s81 + $0x13c] sm:$0xf]
    %v162 = vld [vmem:[%s81 + $0x140] sm:$0xf]
    %v163 = vld [vmem:[%s81 + $0x144] sm:$0xf]
    %v164 = vld [vmem:[%s81 + $0x148] sm:$0xf]
    %v165 = vld [vmem:[%s81 + $0x14c] sm:$0xf]
    %v166 = vld [vmem:[%s81 + $0x150] sm:$0xf]
    %v167 = vld [vmem:[%s81 + $0x154] sm:$0xf]
    %v168 = vld [vmem:[%s81 + $0x158] sm:$0xf]
    %v169 = vld [vmem:[%s81 + $0x15c] sm:$0xf]
    %v170 = vld [vmem:[%s81 + $0x160] sm:$0xf]
    %v171 = vld [vmem:[%s81 + $0x164] sm:$0xf]
    %v172 = vld [vmem:[%s81 + $0x168] sm:$0xf]
    %v173 = vld [vmem:[%s81 + $0x16c] sm:$0xf]
    %v174 = vld [vmem:[%s81 + $0x170] sm:$0xf]
    %v175 = vld [vmem:[%s81 + $0x174] sm:$0xf]
    %v176 = vld [vmem:[%s81 + $0x178] sm:$0xf]
    %v177 = vld [vmem:[%s81 + $0x17c] sm:$0xf]
    %v178 = vld [vmem:[%s81 + $0x180] sm:$0xf]
    %v179 = vld [vmem:[%s81 + $0x184] sm:$0xf]
    %v180 = vld [vmem:[%s81 + $0x188] sm:$0xf]
    %v181 = vld [vmem:[%s81 + $0x18c] sm:$0xf]
    %v182 = vld [vmem:[%s81 + $0x190] sm:$0xf]
    %v183 = vld [vmem:[%s81 + $0x194] sm:$0xf]
    %v184 = vld [vmem:[%s81 + $0x198] sm:$0xf]
    %v185 = vld [vmem:[%s81 + $0x19c] sm:$0xf]
    %v186 = vld [vmem:[%s81 + $0x1a0] sm:$0xf]
    %v187 = vld [vmem:[%s81 + $0x1a4] sm:$0xf]
    %v188 = vld [vmem:[%s81 + $0x1a8] sm:$0xf]
    %v189 = vld [vmem:[%s81 + $0x1ac] sm:$0xf]
    %v190 = vld [vmem:[%s81 + $0x1b0] sm:$0xf]
    %v191 = vld [vmem:[%s81 + $0x1b4] sm:$0xf]
    %v192 = vld [vmem:[%s81 + $0x1b8] sm:$0xf]
    %v193 = vld [vmem:[%s81 + $0x1bc] sm:$0xf]
    %v194 = vld [vmem:[%s81 + $0x1c0] sm:$0xf]
    %v195 = vld [vmem:[%s81 + $0x1c4] sm:$0xf]
    %v196 = vld [vmem:[%s81 + $0x1c8] sm:$0xf]
    %v197 = vld [vmem:[%s81 + $0x1cc] sm:$0xf]
    %v198 = vld [vmem:[%s81 + $0x1d0] sm:$0xf]
    %v199 = vld [vmem:[%s81 + $0x1d4] sm:$0xf]
    %v200 = vld [vmem:[%s81 + $0x1d8] sm:$0xf]
    %v201 = vld [vmem:[%s81 + $0x1dc] sm:$0xf]
    %v202 = vld [vmem:[%s81 + $0x1e0] sm:$0xf]
    %v203 = vld [vmem:[%s81 + $0x1e4] sm:$0xf]
    %v204 = vld [vmem:[%s81 + $0x1e8] sm:$0xf]
    %v205 = vld [vmem:[%s81 + $0x1ec] sm:$0xf]
    %v206 = vld [vmem:[%s81 + $0x1f0] sm:$0xf]
    %v207 = vld [vmem:[%s81 + $0x1f4] sm:$0xf]
    %v208 = vld [vmem:[%s81 + $0x1f8] sm:$0xf]
    %v209 = vld [vmem:[%s81 + $0x1fc] sm:$0xf]
    %v210 = vld [vmem:[#allocation2] sm:$0xff]
    %v211 = vld [vmem:[#allocation2 + $0x8] sm:$0xff]
    %v214 = vcombine.high %v210, %v210
    %v216 = vunpack.c.l.s4 1983009808
    %v217 = vunpack.c.0.s8 %v216
    %v218 = vlaneseq
    %v219 = vshrl.u32 %v218, 7
    %v220 = vsub.s32 %v217, %v219
    %v221 = vrot.slane %v210, %v220
    %v223 = vunpack.c.l.s4 1983009808
    %v224 = vunpack.c.0.s8 %v223
    %v225 = vlaneseq
    %v226 = vshrl.u32 %v225, 7
    %v227 = vsub.s32 %v224, %v226
    %v228 = vrot.slane %v214, %v227
    %v229 = vcombine.high %v221, %v221
    %v230 = vcombine.high %v228, %v228
    %v231 = vcombine.high %v211, %v211
    %v233 = vunpack.c.l.s4 1983009808
    %v234 = vunpack.c.0.s8 %v233
    %v235 = vlaneseq
    %v236 = vshrl.u32 %v235, 7
    %v237 = vsub.s32 %v234, %v236
    %v238 = vrot.slane %v211, %v237
    %v240 = vunpack.c.l.s4 1983009808
    %v241 = vunpack.c.0.s8 %v240
    %v242 = vlaneseq
    %v243 = vshrl.u32 %v242, 7
    %v244 = vsub.s32 %v241, %v243
    %v245 = vrot.slane %v231, %v244
    %v246 = vcombine.high %v238, %v238
    %v247 = vcombine.high %v245, %v245
    %v256 = vpack.c.bf16 %v221, %v221
    %v257 = vpack.c.bf16 %v229, %v229
    %v258 = vpack.c.bf16 %v228, %v228
    %v259 = vpack.c.bf16 %v230, %v230
    %v260 = vpack.c.bf16 %v238, %v238
    %v261 = vpack.c.bf16 %v246, %v246
    %v262 = vpack.c.bf16 %v245, %v245
    %v263 = vpack.c.bf16 %v247, %v247
    %v264 = vld [vmem:[%s4] sm:$0x1]
    %v266 = vlaneseq
    %v267 = vshrl.u32 %v266, 7
    %v268 = vsub.s32 0, %v267
    %v269 = vrot.slane %v264, %v268
    %v399 = vunpack.c.l.b16 %v82
    %v400 = vunpack.c.l.b16 %v83
    %v401 = vunpack.c.l.b16 %v84
    %v402 = vunpack.c.l.b16 %v85
    %v403 = vunpack.c.l.b16 %v86
    %v404 = vunpack.c.l.b16 %v87
    %v405 = vunpack.c.l.b16 %v88
    %v406 = vunpack.c.l.b16 %v89
    %v407 = vunpack.c.l.b16 %v90
    %v408 = vunpack.c.l.b16 %v91
    %v409 = vunpack.c.l.b16 %v92
    %v410 = vunpack.c.l.b16 %v93
    %v411 = vunpack.c.l.b16 %v94
    %v412 = vunpack.c.l.b16 %v95
    %v413 = vunpack.c.l.b16 %v96
    %v414 = vunpack.c.l.b16 %v97
    %v415 = vunpack.c.l.b16 %v98
    %v416 = vunpack.c.l.b16 %v99
    %v417 = vunpack.c.l.b16 %v100
    %v418 = vunpack.c.l.b16 %v101
    %v419 = vunpack.c.l.b16 %v102
    %v420 = vunpack.c.l.b16 %v103
    %v421 = vunpack.c.l.b16 %v104
    %v422 = vunpack.c.l.b16 %v105
    %v423 = vunpack.c.l.b16 %v106
    %v424 = vunpack.c.l.b16 %v107
    %v425 = vunpack.c.l.b16 %v108
    %v426 = vunpack.c.l.b16 %v109
    %v427 = vunpack.c.l.b16 %v110
    %v428 = vunpack.c.l.b16 %v111
    %v429 = vunpack.c.l.b16 %v112
    %v430 = vunpack.c.l.b16 %v113
    %v431 = vunpack.c.l.b16 %v114
    %v432 = vunpack.c.l.b16 %v115
    %v433 = vunpack.c.l.b16 %v116
    %v434 = vunpack.c.l.b16 %v117
    %v435 = vunpack.c.l.b16 %v118
    %v436 = vunpack.c.l.b16 %v119
    %v437 = vunpack.c.l.b16 %v120
    %v438 = vunpack.c.l.b16 %v121
    %v439 = vunpack.c.l.b16 %v122
    %v440 = vunpack.c.l.b16 %v123
    %v441 = vunpack.c.l.b16 %v124
    %v442 = vunpack.c.l.b16 %v125
    %v443 = vunpack.c.l.b16 %v126
    %v444 = vunpack.c.l.b16 %v127
    %v445 = vunpack.c.l.b16 %v128
    %v446 = vunpack.c.l.b16 %v129
    %v447 = vunpack.c.l.b16 %v130
    %v448 = vunpack.c.l.b16 %v131
    %v449 = vunpack.c.l.b16 %v132
    %v450 = vunpack.c.l.b16 %v133
    %v451 = vunpack.c.l.b16 %v134
    %v452 = vunpack.c.l.b16 %v135
    %v453 = vunpack.c.l.b16 %v136
    %v454 = vunpack.c.l.b16 %v137
    %v455 = vunpack.c.l.b16 %v138
    %v456 = vunpack.c.l.b16 %v139
    %v457 = vunpack.c.l.b16 %v140
    %v458 = vunpack.c.l.b16 %v141
    %v459 = vunpack.c.l.b16 %v142
    %v460 = vunpack.c.l.b16 %v143
    %v461 = vunpack.c.l.b16 %v144
    %v462 = vunpack.c.l.b16 %v145
    %v463 = vunpack.c.l.b16 %v146
    %v464 = vunpack.c.l.b16 %v147
    %v465 = vunpack.c.l.b16 %v148
    %v466 = vunpack.c.l.b16 %v149
    %v467 = vunpack.c.l.b16 %v150
    %v468 = vunpack.c.l.b16 %v151
    %v469 = vunpack.c.l.b16 %v152
    %v470 = vunpack.c.l.b16 %v153
    %v471 = vunpack.c.l.b16 %v154
    %v472 = vunpack.c.l.b16 %v155
    %v473 = vunpack.c.l.b16 %v156
    %v474 = vunpack.c.l.b16 %v157
    %v475 = vunpack.c.l.b16 %v158
    %v476 = vunpack.c.l.b16 %v159
    %v477 = vunpack.c.l.b16 %v160
    %v478 = vunpack.c.l.b16 %v161
    %v479 = vunpack.c.l.b16 %v162
    %v480 = vunpack.c.l.b16 %v163
    %v481 = vunpack.c.l.b16 %v164
    %v482 = vunpack.c.l.b16 %v165
    %v483 = vunpack.c.l.b16 %v166
    %v484 = vunpack.c.l.b16 %v167
    %v485 = vunpack.c.l.b16 %v168
    %v486 = vunpack.c.l.b16 %v169
    %v487 = vunpack.c.l.b16 %v170
    %v488 = vunpack.c.l.b16 %v171
    %v489 = vunpack.c.l.b16 %v172
    %v490 = vunpack.c.l.b16 %v173
    %v491 = vunpack.c.l.b16 %v174
    %v492 = vunpack.c.l.b16 %v175
    %v493 = vunpack.c.l.b16 %v176
    %v494 = vunpack.c.l.b16 %v177
    %v495 = vunpack.c.l.b16 %v178
    %v496 = vunpack.c.l.b16 %v179
    %v497 = vunpack.c.l.b16 %v180
    %v498 = vunpack.c.l.b16 %v181
    %v499 = vunpack.c.l.b16 %v182
    %v500 = vunpack.c.l.b16 %v183
    %v501 = vunpack.c.l.b16 %v184
    %v502 = vunpack.c.l.b16 %v185
    %v503 = vunpack.c.l.b16 %v186
    %v504 = vunpack.c.l.b16 %v187
    %v505 = vunpack.c.l.b16 %v188
    %v506 = vunpack.c.l.b16 %v189
    %v507 = vunpack.c.l.b16 %v190
    %v508 = vunpack.c.l.b16 %v191
    %v509 = vunpack.c.l.b16 %v192
    %v510 = vunpack.c.l.b16 %v193
    %v511 = vunpack.c.l.b16 %v194
    %v512 = vunpack.c.l.b16 %v195
    %v513 = vunpack.c.l.b16 %v196
    %v514 = vunpack.c.l.b16 %v197
    %v515 = vunpack.c.l.b16 %v198
    %v516 = vunpack.c.l.b16 %v199
    %v517 = vunpack.c.l.b16 %v200
    %v518 = vunpack.c.l.b16 %v201
    %v519 = vunpack.c.l.b16 %v202
    %v520 = vunpack.c.l.b16 %v203
    %v521 = vunpack.c.l.b16 %v204
    %v522 = vunpack.c.l.b16 %v205
    %v523 = vunpack.c.l.b16 %v206
    %v524 = vunpack.c.l.b16 %v207
    %v525 = vunpack.c.l.b16 %v208
    %v526 = vunpack.c.l.b16 %v209
    %v527 = vpack.c.b16 %v400, %v399
    %v528 = vpack.c.b16 %v402, %v401
    %v529 = vpack.c.b16 %v404, %v403
    %v530 = vpack.c.b16 %v406, %v405
    %v531 = vpack.c.b16 %v408, %v407
    %v532 = vpack.c.b16 %v410, %v409
    %v533 = vpack.c.b16 %v412, %v411
    %v534 = vpack.c.b16 %v414, %v413
    %v535 = vpack.c.b16 %v416, %v415
    %v536 = vpack.c.b16 %v418, %v417
    %v537 = vpack.c.b16 %v420, %v419
    %v538 = vpack.c.b16 %v422, %v421
    %v539 = vpack.c.b16 %v424, %v423
    %v540 = vpack.c.b16 %v426, %v425
    %v541 = vpack.c.b16 %v428, %v427
    %v542 = vpack.c.b16 %v430, %v429
    %v543 = vpack.c.b16 %v432, %v431
    %v544 = vpack.c.b16 %v434, %v433
    %v545 = vpack.c.b16 %v436, %v435
    %v546 = vpack.c.b16 %v438, %v437
    %v547 = vpack.c.b16 %v440, %v439
    %v548 = vpack.c.b16 %v442, %v441
    %v549 = vpack.c.b16 %v444, %v443
    %v550 = vpack.c.b16 %v446, %v445
    %v551 = vpack.c.b16 %v448, %v447
    %v552 = vpack.c.b16 %v450, %v449
    %v553 = vpack.c.b16 %v452, %v451
    %v554 = vpack.c.b16 %v454, %v453
    %v555 = vpack.c.b16 %v456, %v455
    %v556 = vpack.c.b16 %v458, %v457
    %v557 = vpack.c.b16 %v460, %v459
    %v558 = vpack.c.b16 %v462, %v461
    %v559 = vpack.c.b16 %v464, %v463
    %v560 = vpack.c.b16 %v466, %v465
    %v561 = vpack.c.b16 %v468, %v467
    %v562 = vpack.c.b16 %v470, %v469
    %v563 = vpack.c.b16 %v472, %v471
    %v564 = vpack.c.b16 %v474, %v473
    %v565 = vpack.c.b16 %v476, %v475
    %v566 = vpack.c.b16 %v478, %v477
    %v567 = vpack.c.b16 %v480, %v479
    %v568 = vpack.c.b16 %v482, %v481
    %v569 = vpack.c.b16 %v484, %v483
    %v570 = vpack.c.b16 %v486, %v485
    %v571 = vpack.c.b16 %v488, %v487
    %v572 = vpack.c.b16 %v490, %v489
    %v573 = vpack.c.b16 %v492, %v491
    %v574 = vpack.c.b16 %v494, %v493
    %v575 = vpack.c.b16 %v496, %v495
    %v576 = vpack.c.b16 %v498, %v497
    %v577 = vpack.c.b16 %v500, %v499
    %v578 = vpack.c.b16 %v502, %v501
    %v579 = vpack.c.b16 %v504, %v503
    %v580 = vpack.c.b16 %v506, %v505
    %v581 = vpack.c.b16 %v508, %v507
    %v582 = vpack.c.b16 %v510, %v509
    %v583 = vpack.c.b16 %v512, %v511
    %v584 = vpack.c.b16 %v514, %v513
    %v585 = vpack.c.b16 %v516, %v515
    %v586 = vpack.c.b16 %v518, %v517
    %v587 = vpack.c.b16 %v520, %v519
    %v588 = vpack.c.b16 %v522, %v521
    %v589 = vpack.c.b16 %v524, %v523
    %v590 = vpack.c.b16 %v526, %v525
    %655 = vmatprep.subr.bf16.mxu0 0
    %656 = vmatpush1.bf16.msra.mxu0 %v534
    %657 = vmatprep.subr.bf16.mxu0 0
    %658 = vmatpush1.bf16.msra.mxu0 %v533
    %659 = vmatprep.subr.bf16.mxu0 0
    %660 = vmatpush1.bf16.msra.mxu0 %v532
    %661 = vmatprep.subr.bf16.mxu0 0
    %662 = vmatpush1.bf16.msra.mxu0 %v531
    %663 = vmatprep.subr.bf16.mxu0 0
    %664 = vmatpush1.bf16.msra.mxu0 %v530
    %665 = vmatprep.subr.bf16.mxu0 0
    %666 = vmatpush1.bf16.msra.mxu0 %v529
    %667 = vmatprep.subr.bf16.mxu0 0
    %668 = vmatpush1.bf16.msra.mxu0 %v528
    %669 = vmatprep.subr.bf16.mxu0 0
    %670 = vmatpush1.bf16.msra.mxu0 %v527
    %671 = vmatprep.subr.bf16.mxu0 0
    %672 = vmatpush2.bf16.msra.mxu0 %v542
    %673 = vmatprep.subr.bf16.mxu0 0
    %674 = vmatpush2.bf16.msra.mxu0 %v541
    %675 = vmatprep.subr.bf16.mxu0 0
    %676 = vmatpush2.bf16.msra.mxu0 %v540
    %677 = vmatprep.subr.bf16.mxu0 0
    %678 = vmatpush2.bf16.msra.mxu0 %v539
    %679 = vmatprep.subr.bf16.mxu0 0
    %680 = vmatpush2.bf16.msra.mxu0 %v538
    %681 = vmatprep.subr.bf16.mxu0 0
    %682 = vmatpush2.bf16.msra.mxu0 %v537
    %683 = vmatprep.subr.bf16.mxu0 0
    %684 = vmatpush2.bf16.msra.mxu0 %v536
    %685 = vmatprep.subr.bf16.mxu0 0
    %686 = vmatpush2.bf16.msra.mxu0 %v535
    %687 = vmatprep.mubr.bf16.mxu0 %v257
    %688 = vmatmul.mubr.bf16.gmra.mxu0 %v256
    %v689 = vpop.f32.mrf.mxu0
    %v690 = vadd.f32 %v269, %v689
    %v691 = vpop.f32.mrf.mxu0
    %v692 = vpop.f32.mrf.mxu0
    %v693 = vpop.f32.mrf.mxu0
    %694 = vdwg.mxu0
    %695 = vmatprep.subr.bf16.mxu0 0
    %696 = vmatpush1.bf16.msra.mxu0 %v550
    %697 = vmatprep.subr.bf16.mxu0 0
    %698 = vmatpush1.bf16.msra.mxu0 %v549
    %699 = vmatprep.subr.bf16.mxu0 0
    %700 = vmatpush1.bf16.msra.mxu0 %v548
    %701 = vmatprep.subr.bf16.mxu0 0
    %702 = vmatpush1.bf16.msra.mxu0 %v547
    %703 = vmatprep.subr.bf16.mxu0 0
    %704 = vmatpush1.bf16.msra.mxu0 %v546
    %705 = vmatprep.subr.bf16.mxu0 0
    %706 = vmatpush1.bf16.msra.mxu0 %v545
    %707 = vmatprep.subr.bf16.mxu0 0
    %708 = vmatpush1.bf16.msra.mxu0 %v544
    %709 = vmatprep.subr.bf16.mxu0 0
    %710 = vmatpush1.bf16.msra.mxu0 %v543
    %711 = vmatprep.subr.bf16.mxu0 0
    %712 = vmatpush2.bf16.msra.mxu0 %v558
    %713 = vmatprep.subr.bf16.mxu0 0
    %714 = vmatpush2.bf16.msra.mxu0 %v557
    %715 = vmatprep.subr.bf16.mxu0 0
    %716 = vmatpush2.bf16.msra.mxu0 %v556
    %717 = vmatprep.subr.bf16.mxu0 0
    %718 = vmatpush2.bf16.msra.mxu0 %v555
    %719 = vmatprep.subr.bf16.mxu0 0
    %720 = vmatpush2.bf16.msra.mxu0 %v554
    %721 = vmatprep.subr.bf16.mxu0 0
    %722 = vmatpush2.bf16.msra.mxu0 %v553
    %723 = vmatprep.subr.bf16.mxu0 0
    %724 = vmatpush2.bf16.msra.mxu0 %v552
    %725 = vmatprep.subr.bf16.mxu0 0
    %726 = vmatpush2.bf16.msra.mxu0 %v551
    %727 = vmatprep.mubr.bf16.mxu0 %v259
    %728 = vmatmul.mubr.bf16.gmra.mxu0 %v258
    %v729 = vpop.f32.mrf.mxu0
    %v730 = vadd.f32 %v690, %v729
    %v731 = vpop.f32.mrf.mxu0
    %v732 = vpop.f32.mrf.mxu0
    %v733 = vpop.f32.mrf.mxu0
    %734 = vdwg.mxu0
    %735 = vmatprep.subr.bf16.mxu0 0
    %736 = vmatpush1.bf16.msra.mxu0 %v566
    %737 = vmatprep.subr.bf16.mxu0 0
    %738 = vmatpush1.bf16.msra.mxu0 %v565
    %739 = vmatprep.subr.bf16.mxu0 0
    %740 = vmatpush1.bf16.msra.mxu0 %v564
    %741 = vmatprep.subr.bf16.mxu0 0
    %742 = vmatpush1.bf16.msra.mxu0 %v563
    %743 = vmatprep.subr.bf16.mxu0 0
    %744 = vmatpush1.bf16.msra.mxu0 %v562
    %745 = vmatprep.subr.bf16.mxu0 0
    %746 = vmatpush1.bf16.msra.mxu0 %v561
    %747 = vmatprep.subr.bf16.mxu0 0
    %748 = vmatpush1.bf16.msra.mxu0 %v560
    %749 = vmatprep.subr.bf16.mxu0 0
    %750 = vmatpush1.bf16.msra.mxu0 %v559
    %751 = vmatprep.subr.bf16.mxu0 0
    %752 = vmatpush2.bf16.msra.mxu0 %v574
    %753 = vmatprep.subr.bf16.mxu0 0
    %754 = vmatpush2.bf16.msra.mxu0 %v573
    %755 = vmatprep.subr.bf16.mxu0 0
    %756 = vmatpush2.bf16.msra.mxu0 %v572
    %757 = vmatprep.subr.bf16.mxu0 0
    %758 = vmatpush2.bf16.msra.mxu0 %v571
    %759 = vmatprep.subr.bf16.mxu0 0
    %760 = vmatpush2.bf16.msra.mxu0 %v570
    %761 = vmatprep.subr.bf16.mxu0 0
    %762 = vmatpush2.bf16.msra.mxu0 %v569
    %763 = vmatprep.subr.bf16.mxu0 0
    %764 = vmatpush2.bf16.msra.mxu0 %v568
    %765 = vmatprep.subr.bf16.mxu0 0
    %766 = vmatpush2.bf16.msra.mxu0 %v567
    %767 = vmatprep.mubr.bf16.mxu0 %v261
    %768 = vmatmul.mubr.bf16.gmra.mxu0 %v260
    %v769 = vpop.f32.mrf.mxu0
    %v770 = vadd.f32 %v730, %v769
    %v771 = vpop.f32.mrf.mxu0
    %v772 = vpop.f32.mrf.mxu0
    %v773 = vpop.f32.mrf.mxu0
    %774 = vdwg.mxu0
    %775 = vmatprep.subr.bf16.mxu0 0
    %776 = vmatpush1.bf16.msra.mxu0 %v582
    %777 = vmatprep.subr.bf16.mxu0 0
    %778 = vmatpush1.bf16.msra.mxu0 %v581
    %779 = vmatprep.subr.bf16.mxu0 0
    %780 = vmatpush1.bf16.msra.mxu0 %v580
    %781 = vmatprep.subr.bf16.mxu0 0
    %782 = vmatpush1.bf16.msra.mxu0 %v579
    %783 = vmatprep.subr.bf16.mxu0 0
    %784 = vmatpush1.bf16.msra.mxu0 %v578
    %785 = vmatprep.subr.bf16.mxu0 0
    %786 = vmatpush1.bf16.msra.mxu0 %v577
    %787 = vmatprep.subr.bf16.mxu0 0
    %788 = vmatpush1.bf16.msra.mxu0 %v576
    %789 = vmatprep.subr.bf16.mxu0 0
    %790 = vmatpush1.bf16.msra.mxu0 %v575
    %791 = vmatprep.subr.bf16.mxu0 0
    %792 = vmatpush2.bf16.msra.mxu0 %v590
    %793 = vmatprep.subr.bf16.mxu0 0
    %794 = vmatpush2.bf16.msra.mxu0 %v589
    %795 = vmatprep.subr.bf16.mxu0 0
    %796 = vmatpush2.bf16.msra.mxu0 %v588
    %797 = vmatprep.subr.bf16.mxu0 0
    %798 = vmatpush2.bf16.msra.mxu0 %v587
    %799 = vmatprep.subr.bf16.mxu0 0
    %800 = vmatpush2.bf16.msra.mxu0 %v586
    %801 = vmatprep.subr.bf16.mxu0 0
    %802 = vmatpush2.bf16.msra.mxu0 %v585
    %803 = vmatprep.subr.bf16.mxu0 0
    %804 = vmatpush2.bf16.msra.mxu0 %v584
    %805 = vmatprep.subr.bf16.mxu0 0
    %806 = vmatpush2.bf16.msra.mxu0 %v583
    %807 = vmatprep.mubr.bf16.mxu0 %v263
    %808 = vmatmul.mubr.bf16.gmra.mxu0 %v262
    %v809 = vpop.f32.mrf.mxu0
    %v810 = vadd.f32 %v770, %v809
    %v811 = vpop.f32.mrf.mxu0
    %v812 = vpop.f32.mrf.mxu0
    %v813 = vpop.f32.mrf.mxu0
    %814 = vdwg.mxu0
    %v815 = vld [vmem:[#allocation5] sm:$0xff]
    %v816 = vld [vmem:[#allocation5 + $0x8] sm:$0xff]
    %v819 = vcombine.high %v815, %v815
    %v821 = vunpack.c.l.s4 1983009808
    %v822 = vunpack.c.0.s8 %v821
    %v823 = vlaneseq
    %v824 = vshrl.u32 %v823, 7
    %v825 = vsub.s32 %v822, %v824
    %v826 = vrot.slane %v815, %v825
    %v828 = vunpack.c.l.s4 1983009808
    %v829 = vunpack.c.0.s8 %v828
    %v830 = vlaneseq
    %v831 = vshrl.u32 %v830, 7
    %v832 = vsub.s32 %v829, %v831
    %v833 = vrot.slane %v819, %v832
    %v834 = vcombine.high %v826, %v826
    %v835 = vcombine.high %v833, %v833
    %v836 = vcombine.high %v816, %v816
    %v838 = vunpack.c.l.s4 1983009808
    %v839 = vunpack.c.0.s8 %v838
    %v840 = vlaneseq
    %v841 = vshrl.u32 %v840, 7
    %v842 = vsub.s32 %v839, %v841
    %v843 = vrot.slane %v816, %v842
    %v845 = vunpack.c.l.s4 1983009808
    %v846 = vunpack.c.0.s8 %v845
    %v847 = vlaneseq
    %v848 = vshrl.u32 %v847, 7
    %v849 = vsub.s32 %v846, %v848
    %v850 = vrot.slane %v836, %v849
    %v851 = vcombine.high %v843, %v843
    %v852 = vcombine.high %v850, %v850
    %v861 = vpack.c.bf16 %v826, %v826
    %v862 = vpack.c.bf16 %v834, %v834
    %v863 = vpack.c.bf16 %v833, %v833
    %v864 = vpack.c.bf16 %v835, %v835
    %v865 = vpack.c.bf16 %v843, %v843
    %v866 = vpack.c.bf16 %v851, %v851
    %v867 = vpack.c.bf16 %v850, %v850
    %v868 = vpack.c.bf16 %v852, %v852
    %869 = vmatprep.subr.bf16.mxu0 0
    %870 = vmatpush1.bf16.msra.mxu0 %v534
    %871 = vmatprep.subr.bf16.mxu0 0
    %872 = vmatpush1.bf16.msra.mxu0 %v533
    %873 = vmatprep.subr.bf16.mxu0 0
    %874 = vmatpush1.bf16.msra.mxu0 %v532
    %875 = vmatprep.subr.bf16.mxu0 0
    %876 = vmatpush1.bf16.msra.mxu0 %v531
    %877 = vmatprep.subr.bf16.mxu0 0
    %878 = vmatpush1.bf16.msra.mxu0 %v530
    %879 = vmatprep.subr.bf16.mxu0 0
    %880 = vmatpush1.bf16.msra.mxu0 %v529
    %881 = vmatprep.subr.bf16.mxu0 0
    %882 = vmatpush1.bf16.msra.mxu0 %v528
    %883 = vmatprep.subr.bf16.mxu0 0
    %884 = vmatpush1.bf16.msra.mxu0 %v527
    %885 = vmatprep.subr.bf16.mxu0 0
    %886 = vmatpush2.bf16.msra.mxu0 %v542
    %887 = vmatprep.subr.bf16.mxu0 0
    %888 = vmatpush2.bf16.msra.mxu0 %v541
    %889 = vmatprep.subr.bf16.mxu0 0
    %890 = vmatpush2.bf16.msra.mxu0 %v540
    %891 = vmatprep.subr.bf16.mxu0 0
    %892 = vmatpush2.bf16.msra.mxu0 %v539
    %893 = vmatprep.subr.bf16.mxu0 0
    %894 = vmatpush2.bf16.msra.mxu0 %v538
    %895 = vmatprep.subr.bf16.mxu0 0
    %896 = vmatpush2.bf16.msra.mxu0 %v537
    %897 = vmatprep.subr.bf16.mxu0 0
    %898 = vmatpush2.bf16.msra.mxu0 %v536
    %899 = vmatprep.subr.bf16.mxu0 0
    %900 = vmatpush2.bf16.msra.mxu0 %v535
    %901 = vmatprep.mubr.bf16.mxu0 %v862
    %902 = vmatmul.mubr.bf16.gmra.mxu0 %v861
    %v903 = vpop.f32.mrf.mxu0
    %v904 = vadd.f32 %v269, %v903
    %v905 = vpop.f32.mrf.mxu0
    %v906 = vpop.f32.mrf.mxu0
    %v907 = vpop.f32.mrf.mxu0
    %908 = vdwg.mxu0
    %909 = vmatprep.subr.bf16.mxu0 0
    %910 = vmatpush1.bf16.msra.mxu0 %v550
    %911 = vmatprep.subr.bf16.mxu0 0
    %912 = vmatpush1.bf16.msra.mxu0 %v549
    %913 = vmatprep.subr.bf16.mxu0 0
    %914 = vmatpush1.bf16.msra.mxu0 %v548
    %915 = vmatprep.subr.bf16.mxu0 0
    %916 = vmatpush1.bf16.msra.mxu0 %v547
    %917 = vmatprep.subr.bf16.mxu0 0
    %918 = vmatpush1.bf16.msra.mxu0 %v546
    %919 = vmatprep.subr.bf16.mxu0 0
    %920 = vmatpush1.bf16.msra.mxu0 %v545
    %921 = vmatprep.subr.bf16.mxu0 0
    %922 = vmatpush1.bf16.msra.mxu0 %v544
    %923 = vmatprep.subr.bf16.mxu0 0
    %924 = vmatpush1.bf16.msra.mxu0 %v543
    %925 = vmatprep.subr.bf16.mxu0 0
    %926 = vmatpush2.bf16.msra.mxu0 %v558
    %927 = vmatprep.subr.bf16.mxu0 0
    %928 = vmatpush2.bf16.msra.mxu0 %v557
    %929 = vmatprep.subr.bf16.mxu0 0
    %930 = vmatpush2.bf16.msra.mxu0 %v556
    %931 = vmatprep.subr.bf16.mxu0 0
    %932 = vmatpush2.bf16.msra.mxu0 %v555
    %933 = vmatprep.subr.bf16.mxu0 0
    %934 = vmatpush2.bf16.msra.mxu0 %v554
    %935 = vmatprep.subr.bf16.mxu0 0
    %936 = vmatpush2.bf16.msra.mxu0 %v553
    %937 = vmatprep.subr.bf16.mxu0 0
    %938 = vmatpush2.bf16.msra.mxu0 %v552
    %939 = vmatprep.subr.bf16.mxu0 0
    %940 = vmatpush2.bf16.msra.mxu0 %v551
    %941 = vmatprep.mubr.bf16.mxu0 %v864
    %942 = vmatmul.mubr.bf16.gmra.mxu0 %v863
    %v943 = vpop.f32.mrf.mxu0
    %v944 = vadd.f32 %v904, %v943
    %v945 = vpop.f32.mrf.mxu0
    %v946 = vpop.f32.mrf.mxu0
    %v947 = vpop.f32.mrf.mxu0
    %948 = vdwg.mxu0
    %949 = vmatprep.subr.bf16.mxu0 0
    %950 = vmatpush1.bf16.msra.mxu0 %v566
    %951 = vmatprep.subr.bf16.mxu0 0
    %952 = vmatpush1.bf16.msra.mxu0 %v565
    %953 = vmatprep.subr.bf16.mxu0 0
    %954 = vmatpush1.bf16.msra.mxu0 %v564
    %955 = vmatprep.subr.bf16.mxu0 0
    %956 = vmatpush1.bf16.msra.mxu0 %v563
    %957 = vmatprep.subr.bf16.mxu0 0
    %958 = vmatpush1.bf16.msra.mxu0 %v562
    %959 = vmatprep.subr.bf16.mxu0 0
    %960 = vmatpush1.bf16.msra.mxu0 %v561
    %961 = vmatprep.subr.bf16.mxu0 0
    %962 = vmatpush1.bf16.msra.mxu0 %v560
    %963 = vmatprep.subr.bf16.mxu0 0
    %964 = vmatpush1.bf16.msra.mxu0 %v559
    %965 = vmatprep.subr.bf16.mxu0 0
    %966 = vmatpush2.bf16.msra.mxu0 %v574
    %967 = vmatprep.subr.bf16.mxu0 0
    %968 = vmatpush2.bf16.msra.mxu0 %v573
    %969 = vmatprep.subr.bf16.mxu0 0
    %970 = vmatpush2.bf16.msra.mxu0 %v572
    %971 = vmatprep.subr.bf16.mxu0 0
    %972 = vmatpush2.bf16.msra.mxu0 %v571
    %973 = vmatprep.subr.bf16.mxu0 0
    %974 = vmatpush2.bf16.msra.mxu0 %v570
    %975 = vmatprep.subr.bf16.mxu0 0
    %976 = vmatpush2.bf16.msra.mxu0 %v569
    %977 = vmatprep.subr.bf16.mxu0 0
    %978 = vmatpush2.bf16.msra.mxu0 %v568
    %979 = vmatprep.subr.bf16.mxu0 0
    %980 = vmatpush2.bf16.msra.mxu0 %v567
    %981 = vmatprep.mubr.bf16.mxu0 %v866
    %982 = vmatmul.mubr.bf16.gmra.mxu0 %v865
    %v983 = vpop.f32.mrf.mxu0
    %v984 = vadd.f32 %v944, %v983
    %v985 = vpop.f32.mrf.mxu0
    %v986 = vpop.f32.mrf.mxu0
    %v987 = vpop.f32.mrf.mxu0
    %988 = vdwg.mxu0
    %989 = vmatprep.subr.bf16.mxu0 0
    %990 = vmatpush1.bf16.msra.mxu0 %v582
    %991 = vmatprep.subr.bf16.mxu0 0
    %992 = vmatpush1.bf16.msra.mxu0 %v581
    %993 = vmatprep.subr.bf16.mxu0 0
    %994 = vmatpush1.bf16.msra.mxu0 %v580
    %995 = vmatprep.subr.bf16.mxu0 0
    %996 = vmatpush1.bf16.msra.mxu0 %v579
    %997 = vmatprep.subr.bf16.mxu0 0
    %998 = vmatpush1.bf16.msra.mxu0 %v578
    %999 = vmatprep.subr.bf16.mxu0 0
    %1000 = vmatpush1.bf16.msra.mxu0 %v577
    %1001 = vmatprep.subr.bf16.mxu0 0
    %1002 = vmatpush1.bf16.msra.mxu0 %v576
    %1003 = vmatprep.subr.bf16.mxu0 0
    %1004 = vmatpush1.bf16.msra.mxu0 %v575
    %1005 = vmatprep.subr.bf16.mxu0 0
    %1006 = vmatpush2.bf16.msra.mxu0 %v590
    %1007 = vmatprep.subr.bf16.mxu0 0
    %1008 = vmatpush2.bf16.msra.mxu0 %v589
    %1009 = vmatprep.subr.bf16.mxu0 0
    %1010 = vmatpush2.bf16.msra.mxu0 %v588
    %1011 = vmatprep.subr.bf16.mxu0 0
    %1012 = vmatpush2.bf16.msra.mxu0 %v587
    %1013 = vmatprep.subr.bf16.mxu0 0
    %1014 = vmatpush2.bf16.msra.mxu0 %v586
    %1015 = vmatprep.subr.bf16.mxu0 0
    %1016 = vmatpush2.bf16.msra.mxu0 %v585
    %1017 = vmatprep.subr.bf16.mxu0 0
    %1018 = vmatpush2.bf16.msra.mxu0 %v584
    %1019 = vmatprep.subr.bf16.mxu0 0
    %1020 = vmatpush2.bf16.msra.mxu0 %v583
    %1021 = vmatprep.mubr.bf16.mxu0 %v868
    %1022 = vmatmul.mubr.bf16.gmra.mxu0 %v867
    %v1023 = vpop.f32.mrf.mxu0
    %v1024 = vadd.f32 %v984, %v1023
    %v1025 = vpop.f32.mrf.mxu0
    %v1026 = vpop.f32.mrf.mxu0
    %v1027 = vpop.f32.mrf.mxu0
    %1028 = vdwg.mxu0
    %v1029 = vld [vmem:[#allocation7] sm:$0xff]
    %v1030 = vld [vmem:[#allocation7 + $0x8] sm:$0xff]
    %v1033 = vcombine.high %v1029, %v1029
    %v1035 = vunpack.c.l.s4 1983009808
    %v1036 = vunpack.c.0.s8 %v1035
    %v1037 = vlaneseq
    %v1038 = vshrl.u32 %v1037, 7
    %v1039 = vsub.s32 %v1036, %v1038
    %v1040 = vrot.slane %v1029, %v1039
    %v1042 = vunpack.c.l.s4 1983009808
    %v1043 = vunpack.c.0.s8 %v1042
    %v1044 = vlaneseq
    %v1045 = vshrl.u32 %v1044, 7
    %v1046 = vsub.s32 %v1043, %v1045
    %v1047 = vrot.slane %v1033, %v1046
    %v1048 = vcombine.high %v1040, %v1040
    %v1049 = vcombine.high %v1047, %v1047
    %v1050 = vcombine.high %v1030, %v1030
    %v1052 = vunpack.c.l.s4 1983009808
    %v1053 = vunpack.c.0.s8 %v1052
    %v1054 = vlaneseq
    %v1055 = vshrl.u32 %v1054, 7
    %v1056 = vsub.s32 %v1053, %v1055
    %v1057 = vrot.slane %v1030, %v1056
    %v1059 = vunpack.c.l.s4 1983009808
    %v1060 = vunpack.c.0.s8 %v1059
    %v1061 = vlaneseq
    %v1062 = vshrl.u32 %v1061, 7
    %v1063 = vsub.s32 %v1060, %v1062
    %v1064 = vrot.slane %v1050, %v1063
    %v1065 = vcombine.high %v1057, %v1057
    %v1066 = vcombine.high %v1064, %v1064
    %v1075 = vpack.c.bf16 %v1040, %v1040
    %v1076 = vpack.c.bf16 %v1048, %v1048
    %v1077 = vpack.c.bf16 %v1047, %v1047
    %v1078 = vpack.c.bf16 %v1049, %v1049
    %v1079 = vpack.c.bf16 %v1057, %v1057
    %v1080 = vpack.c.bf16 %v1065, %v1065
    %v1081 = vpack.c.bf16 %v1064, %v1064
    %v1082 = vpack.c.bf16 %v1066, %v1066
    %1083 = vmatprep.subr.bf16.mxu0 0
    %1084 = vmatpush1.bf16.msra.mxu0 %v534
    %1085 = vmatprep.subr.bf16.mxu0 0
    %1086 = vmatpush1.bf16.msra.mxu0 %v533
    %1087 = vmatprep.subr.bf16.mxu0 0
    %1088 = vmatpush1.bf16.msra.mxu0 %v532
    %1089 = vmatprep.subr.bf16.mxu0 0
    %1090 = vmatpush1.bf16.msra.mxu0 %v531
    %1091 = vmatprep.subr.bf16.mxu0 0
    %1092 = vmatpush1.bf16.msra.mxu0 %v530
    %1093 = vmatprep.subr.bf16.mxu0 0
    %1094 = vmatpush1.bf16.msra.mxu0 %v529
    %1095 = vmatprep.subr.bf16.mxu0 0
    %1096 = vmatpush1.bf16.msra.mxu0 %v528
    %1097 = vmatprep.subr.bf16.mxu0 0
    %1098 = vmatpush1.bf16.msra.mxu0 %v527
    %1099 = vmatprep.subr.bf16.mxu0 0
    %1100 = vmatpush2.bf16.msra.mxu0 %v542
    %1101 = vmatprep.subr.bf16.mxu0 0
    %1102 = vmatpush2.bf16.msra.mxu0 %v541
    %1103 = vmatprep.subr.bf16.mxu0 0
    %1104 = vmatpush2.bf16.msra.mxu0 %v540
    %1105 = vmatprep.subr.bf16.mxu0 0
    %1106 = vmatpush2.bf16.msra.mxu0 %v539
    %1107 = vmatprep.subr.bf16.mxu0 0
    %1108 = vmatpush2.bf16.msra.mxu0 %v538
    %1109 = vmatprep.subr.bf16.mxu0 0
    %1110 = vmatpush2.bf16.msra.mxu0 %v537
    %1111 = vmatprep.subr.bf16.mxu0 0
    %1112 = vmatpush2.bf16.msra.mxu0 %v536
    %1113 = vmatprep.subr.bf16.mxu0 0
    %1114 = vmatpush2.bf16.msra.mxu0 %v535
    %1115 = vmatprep.mubr.bf16.mxu0 %v1076
    %1116 = vmatmul.mubr.bf16.gmra.mxu0 %v1075
    %v1117 = vpop.f32.mrf.mxu0
    %v1118 = vadd.f32 %v269, %v1117
    %v1119 = vpop.f32.mrf.mxu0
    %v1120 = vpop.f32.mrf.mxu0
    %v1121 = vpop.f32.mrf.mxu0
    %1122 = vdwg.mxu0
    %1123 = vmatprep.subr.bf16.mxu0 0
    %1124 = vmatpush1.bf16.msra.mxu0 %v550
    %1125 = vmatprep.subr.bf16.mxu0 0
    %1126 = vmatpush1.bf16.msra.mxu0 %v549
    %1127 = vmatprep.subr.bf16.mxu0 0
    %1128 = vmatpush1.bf16.msra.mxu0 %v548
    %1129 = vmatprep.subr.bf16.mxu0 0
    %1130 = vmatpush1.bf16.msra.mxu0 %v547
    %1131 = vmatprep.subr.bf16.mxu0 0
    %1132 = vmatpush1.bf16.msra.mxu0 %v546
    %1133 = vmatprep.subr.bf16.mxu0 0
    %1134 = vmatpush1.bf16.msra.mxu0 %v545
    %1135 = vmatprep.subr.bf16.mxu0 0
    %1136 = vmatpush1.bf16.msra.mxu0 %v544
    %1137 = vmatprep.subr.bf16.mxu0 0
    %1138 = vmatpush1.bf16.msra.mxu0 %v543
    %1139 = vmatprep.subr.bf16.mxu0 0
    %1140 = vmatpush2.bf16.msra.mxu0 %v558
    %1141 = vmatprep.subr.bf16.mxu0 0
    %1142 = vmatpush2.bf16.msra.mxu0 %v557
    %1143 = vmatprep.subr.bf16.mxu0 0
    %1144 = vmatpush2.bf16.msra.mxu0 %v556
    %1145 = vmatprep.subr.bf16.mxu0 0
    %1146 = vmatpush2.bf16.msra.mxu0 %v555
    %1147 = vmatprep.subr.bf16.mxu0 0
    %1148 = vmatpush2.bf16.msra.mxu0 %v554
    %1149 = vmatprep.subr.bf16.mxu0 0
    %1150 = vmatpush2.bf16.msra.mxu0 %v553
    %1151 = vmatprep.subr.bf16.mxu0 0
    %1152 = vmatpush2.bf16.msra.mxu0 %v552
    %1153 = vmatprep.subr.bf16.mxu0 0
    %1154 = vmatpush2.bf16.msra.mxu0 %v551
    %1155 = vmatprep.mubr.bf16.mxu0 %v1078
    %1156 = vmatmul.mubr.bf16.gmra.mxu0 %v1077
    %v1157 = vpop.f32.mrf.mxu0
    %v1158 = vadd.f32 %v1118, %v1157
    %v1159 = vpop.f32.mrf.mxu0
    %v1160 = vpop.f32.mrf.mxu0
    %v1161 = vpop.f32.mrf.mxu0
    %1162 = vdwg.mxu0
    %1163 = vmatprep.subr.bf16.mxu0 0
    %1164 = vmatpush1.bf16.msra.mxu0 %v566
    %1165 = vmatprep.subr.bf16.mxu0 0
    %1166 = vmatpush1.bf16.msra.mxu0 %v565
    %1167 = vmatprep.subr.bf16.mxu0 0
    %1168 = vmatpush1.bf16.msra.mxu0 %v564
    %1169 = vmatprep.subr.bf16.mxu0 0
    %1170 = vmatpush1.bf16.msra.mxu0 %v563
    %1171 = vmatprep.subr.bf16.mxu0 0
    %1172 = vmatpush1.bf16.msra.mxu0 %v562
    %1173 = vmatprep.subr.bf16.mxu0 0
    %1174 = vmatpush1.bf16.msra.mxu0 %v561
    %1175 = vmatprep.subr.bf16.mxu0 0
    %1176 = vmatpush1.bf16.msra.mxu0 %v560
    %1177 = vmatprep.subr.bf16.mxu0 0
    %1178 = vmatpush1.bf16.msra.mxu0 %v559
    %1179 = vmatprep.subr.bf16.mxu0 0
    %1180 = vmatpush2.bf16.msra.mxu0 %v574
    %1181 = vmatprep.subr.bf16.mxu0 0
    %1182 = vmatpush2.bf16.msra.mxu0 %v573
    %1183 = vmatprep.subr.bf16.mxu0 0
    %1184 = vmatpush2.bf16.msra.mxu0 %v572
    %1185 = vmatprep.subr.bf16.mxu0 0
    %1186 = vmatpush2.bf16.msra.mxu0 %v571
    %1187 = vmatprep.subr.bf16.mxu0 0
    %1188 = vmatpush2.bf16.msra.mxu0 %v570
    %1189 = vmatprep.subr.bf16.mxu0 0
    %1190 = vmatpush2.bf16.msra.mxu0 %v569
    %1191 = vmatprep.subr.bf16.mxu0 0
    %1192 = vmatpush2.bf16.msra.mxu0 %v568
    %1193 = vmatprep.subr.bf16.mxu0 0
    %1194 = vmatpush2.bf16.msra.mxu0 %v567
    %1195 = vmatprep.mubr.bf16.mxu0 %v1080
    %1196 = vmatmul.mubr.bf16.gmra.mxu0 %v1079
    %v1197 = vpop.f32.mrf.mxu0
    %v1198 = vadd.f32 %v1158, %v1197
    %v1199 = vpop.f32.mrf.mxu0
    %v1200 = vpop.f32.mrf.mxu0
    %v1201 = vpop.f32.mrf.mxu0
    %1202 = vdwg.mxu0
    %1203 = vmatprep.subr.bf16.mxu0 0
    %1204 = vmatpush1.bf16.msra.mxu0 %v582
    %1205 = vmatprep.subr.bf16.mxu0 0
    %1206 = vmatpush1.bf16.msra.mxu0 %v581
    %1207 = vmatprep.subr.bf16.mxu0 0
    %1208 = vmatpush1.bf16.msra.mxu0 %v580
    %1209 = vmatprep.subr.bf16.mxu0 0
    %1210 = vmatpush1.bf16.msra.mxu0 %v579
    %1211 = vmatprep.subr.bf16.mxu0 0
    %1212 = vmatpush1.bf16.msra.mxu0 %v578
    %1213 = vmatprep.subr.bf16.mxu0 0
    %1214 = vmatpush1.bf16.msra.mxu0 %v577
    %1215 = vmatprep.subr.bf16.mxu0 0
    %1216 = vmatpush1.bf16.msra.mxu0 %v576
    %1217 = vmatprep.subr.bf16.mxu0 0
    %1218 = vmatpush1.bf16.msra.mxu0 %v575
    %1219 = vmatprep.subr.bf16.mxu0 0
    %1220 = vmatpush2.bf16.msra.mxu0 %v590
    %1221 = vmatprep.subr.bf16.mxu0 0
    %1222 = vmatpush2.bf16.msra.mxu0 %v589
    %1223 = vmatprep.subr.bf16.mxu0 0
    %1224 = vmatpush2.bf16.msra.mxu0 %v588
    %1225 = vmatprep.subr.bf16.mxu0 0
    %1226 = vmatpush2.bf16.msra.mxu0 %v587
    %1227 = vmatprep.subr.bf16.mxu0 0
    %1228 = vmatpush2.bf16.msra.mxu0 %v586
    %1229 = vmatprep.subr.bf16.mxu0 0
    %1230 = vmatpush2.bf16.msra.mxu0 %v585
    %1231 = vmatprep.subr.bf16.mxu0 0
    %1232 = vmatpush2.bf16.msra.mxu0 %v584
    %1233 = vmatprep.subr.bf16.mxu0 0
    %1234 = vmatpush2.bf16.msra.mxu0 %v583
    %1235 = vmatprep.mubr.bf16.mxu0 %v1082
    %1236 = vmatmul.mubr.bf16.gmra.mxu0 %v1081
    %v1237 = vpop.f32.mrf.mxu0
    %v1238 = vadd.f32 %v1198, %v1237
    %v1239 = vpop.f32.mrf.mxu0
    %v1240 = vpop.f32.mrf.mxu0
    %v1241 = vpop.f32.mrf.mxu0
    %1242 = vdwg.mxu0
    %v1243 = vld [vmem:[%s5] sm:$0x3]
    %v1244 = vmax.f32 %v1243, 0.0
    %v1245 = vmul.f32 %v810, %v1244
    %v1246 = vmul.f32 %v1024, %v1244
    %v1247 = vmul.f32 %v1238, %v1244
    %v1248 = vlaneseq
    %v1249 = vand.u32 %v1248, 127
    %vm1250 = vcmp.lt.s32.totalorder %v1249, 32
    %v1251 = vsel %vm1250, 1e-06, 0.0
    %v1252 = vsub.f32 %v1245, %v1246
    %v1253 = vadd.f32 %v1252, %v1251
    %v1254 = vsub.f32 %v1245, %v1247
    %v1255 = vadd.f32 %v1254, %v1251
    %v1256 = vmul.f32 %v1253, %v1253
    %vm1257 = vcmask 1041408
    %v1258 = vsel %vm1257, %v1256, 0.0
    %1259 = vadd.xlane.f32.xlu0 %v1258
    %v1260 = vpop.xlane.xlu0 %1259
    %v1261 = vrsqrt.pop %v1260
    %v1262 = vmul.f32 %v1260, %v1261
    %vm1263 = vcmp.eq.f32.partialorder %v1260, inf
    %v1264 = vsel %vm1263, %v1260, %v1262
    %vm1265 = vcmp.eq.f32.partialorder %v1260, 0.0
    %v1266 = vand.u32 %v1260, 2147483648
    %v1267 = vsel %vm1265, %v1266, %v1264
    %v1268 = vmul.f32 %v1255, %v1255
    %v1269 = vsel %vm1257, %v1268, 0.0
    %1270 = vadd.xlane.f32.xlu0 %v1269
    %v1271 = vpop.xlane.xlu0 %1270
    %v1272 = vrsqrt.pop %v1271
    %v1273 = vmul.f32 %v1271, %v1272
    %vm1274 = vcmp.eq.f32.partialorder %v1271, inf
    %v1275 = vsel %vm1274, %v1271, %v1273
    %vm1276 = vcmp.eq.f32.partialorder %v1271, 0.0
    %v1277 = vand.u32 %v1271, 2147483648
    %v1278 = vsel %vm1276, %v1277, %v1275
    %vm1279 = vcmask 7168
    %v1280 = vsel %vm1279, %v1267, %v1278
    %vm1281 = vcmask 9216
    %1282 = vst.msk [vmem:[#allocation10] sm:$0x3] %vm1281, %v1280
    %v1283 = vand.u32 2147483647, %v1244
    %v1284 = vsel %vm1257, %v1283, 0.0
    %1285 = vadd.xlane.f32.xlu0 %v1284
    %v1286 = vpop.xlane.xlu0 %1285
    %v1287 = vrot.slane %v1286, 4
    %v1288 = vadd.f32 %v1286, %v1287
    %v1289 = vrot.slane %v1288, 2
    %v1290 = vadd.f32 %v1288, %v1289
    %v1291 = vrot.slane %v1290, 1
    %v1292 = vadd.f32 %v1290, %v1291
    %s1293 = vtos %v1292
    %v1294 = vstv %s1293
    %v1295 = vmul.f32 %v810, %v810
    %v1296 = vsel %vm1257, %v1295, 0.0
    %1297 = vadd.xlane.f32.xlu0 %v1296
    %v1298 = vpop.xlane.xlu0 %1297
    %v1299 = vrot.slane %v1298, 4
    %v1300 = vadd.f32 %v1298, %v1299
    %v1301 = vrot.slane %v1300, 2
    %v1302 = vadd.f32 %v1300, %v1301
    %v1303 = vrot.slane %v1302, 1
    %v1304 = vadd.f32 %v1302, %v1303
    %s1305 = vtos %v1304
    %v1306 = vstv %s1305
    %v1307 = vmul.f32 %v1024, %v1024
    %v1308 = vsel %vm1257, %v1307, 0.0
    %1309 = vadd.xlane.f32.xlu0 %v1308
    %v1310 = vpop.xlane.xlu0 %1309
    %v1311 = vrot.slane %v1310, 4
    %v1312 = vadd.f32 %v1310, %v1311
    %v1313 = vrot.slane %v1312, 2
    %v1314 = vadd.f32 %v1312, %v1313
    %v1315 = vrot.slane %v1314, 1
    %v1316 = vadd.f32 %v1314, %v1315
    %s1317 = vtos %v1316
    %v1318 = vstv %s1317
    %v1319 = vmul.f32 %v1238, %v1238
    %v1320 = vsel %vm1257, %v1319, 0.0
    %1321 = vadd.xlane.f32.xlu0 %v1320
    %v1322 = vpop.xlane.xlu0 %1321
    %v1323 = vrot.slane %v1322, 4
    %v1324 = vadd.f32 %v1322, %v1323
    %v1325 = vrot.slane %v1324, 2
    %v1326 = vadd.f32 %v1324, %v1325
    %v1327 = vrot.slane %v1326, 1
    %v1328 = vadd.f32 %v1326, %v1327
    %s1329 = vtos %v1328
    %v1330 = vstv %s1329
    %v1331 = vmul.f32 %v1245, %v1245
    %v1332 = vsel %vm1257, %v1331, 0.0
    %1333 = vadd.xlane.f32.xlu0 %v1332
    %v1334 = vpop.xlane.xlu0 %1333
    %v1335 = vrot.slane %v1334, 4
    %v1336 = vadd.f32 %v1334, %v1335
    %v1337 = vrot.slane %v1336, 2
    %v1338 = vadd.f32 %v1336, %v1337
    %v1339 = vrot.slane %v1338, 1
    %v1340 = vadd.f32 %v1338, %v1339
    %s1341 = vtos %v1340
    %v1342 = vstv %s1341
    %v1343 = vmul.f32 %v1246, %v1246
    %v1344 = vsel %vm1257, %v1343, 0.0
    %1345 = vadd.xlane.f32.xlu0 %v1344
    %v1346 = vpop.xlane.xlu0 %1345
    %v1347 = vrot.slane %v1346, 4
    %v1348 = vadd.f32 %v1346, %v1347
    %v1349 = vrot.slane %v1348, 2
    %v1350 = vadd.f32 %v1348, %v1349
    %v1351 = vrot.slane %v1350, 1
    %v1352 = vadd.f32 %v1350, %v1351
    %s1353 = vtos %v1352
    %v1354 = vstv %s1353
    %v1355 = vmul.f32 %v1247, %v1247
    %v1356 = vsel %vm1257, %v1355, 0.0
    %1357 = vadd.xlane.f32.xlu0 %v1356
    %v1358 = vpop.xlane.xlu0 %1357
    %v1359 = vrot.slane %v1358, 4
    %v1360 = vadd.f32 %v1358, %v1359
    %v1361 = vrot.slane %v1360, 2
    %v1362 = vadd.f32 %v1360, %v1361
    %v1363 = vrot.slane %v1362, 1
    %v1364 = vadd.f32 %v1362, %v1363
    %s1365 = vtos %v1364
    %v1366 = vstv %s1365
    %vm1367 = vcmask 1040384
    %v1368 = vsel %vm1367, %v1294, %v1306
    %v1369 = vsel %vm1257, %v1368, %v1318
    %vm1370 = vcmask 1042432
    %v1371 = vsel %vm1370, %v1369, %v1330
    %vm1372 = vcmask 1043456
    %v1373 = vsel %vm1372, %v1371, %v1342
    %vm1374 = vcmask 1044480
    %v1375 = vsel %vm1374, %v1373, %v1354
    %vm1376 = vcmask 1045504
    %v1377 = vsel %vm1376, %v1375, %v1366
    %vm1378 = vcmask 1046528
    %v1379 = vsel %vm1378, %v1377, 0.0
    %1380 = vst [vmem:[#allocation11] sm:$0xff] %v1379
    // Predicated region
    $region42: #{tpu_custom_call.1} parent=1 // pred_check
      _
    $region43: #{tpu_custom_call.1} parent=1 // pred_check_branch
      %1382 = sbr.rel (0) target = $region45
    $region44: #{tpu_custom_call.1} parent=1 // pred_region
      %s1384 = ssub.s32 32, 32
      %1385 = vsyncadd [#allocation4], %s1384
      %s1387 = sshll.u32 [#allocation10], 4
      %s1388 = int_to_ptr.vmem [resolvable:$true] %s1387
      %1390 = dma.vmem_to_hbm [thread:$0]  %s1388, 32, %s6, [#allocation4]
    $region45: #{tpu_custom_call.1} parent=1 // pred_fallthru
      _
    // Predicated region
    $region46: #{tpu_custom_call.1} parent=1 // pred_check
      _
    $region47: #{tpu_custom_call.1} parent=1 // pred_check_branch
      %1392 = sbr.rel (0) target = $region49
    $region48: #{tpu_custom_call.1} parent=1 // pred_region
      %s1394 = ssub.s32 128, 128
      %1395 = vsyncadd [#allocation12], %s1394
      %s1397 = sshll.u32 [#allocation11], 4
      %s1398 = int_to_ptr.vmem [resolvable:$true] %s1397
      %1400 = dma.vmem_to_hbm [thread:$0]  %s1398, 128, %s7, [#allocation12]
    $region49: #{tpu_custom_call.1} parent=1 // pred_fallthru
      _
    // Predicated region
    $region50: #{tpu_custom_call.1} parent=1 // pred_check
      _
    $region51: #{tpu_custom_call.1} parent=1 // pred_check_branch
      %1402 = sbr.rel (0) target = $region53
    $region52: #{tpu_custom_call.1} parent=1 // pred_region
      %1403 = dma.done [#allocation4], 32
    $region53: #{tpu_custom_call.1} parent=1 // pred_fallthru
      _
    // Predicated region
    $region54: #{tpu_custom_call.1} parent=1 // pred_check
      _
    $region55: #{tpu_custom_call.1} parent=1 // pred_check_branch
      %1405 = sbr.rel (0) target = $region57
    $region56: #{tpu_custom_call.1} parent=1 // pred_region
      %1406 = dma.done [#allocation12], 128
    $region57: #{tpu_custom_call.1} parent=1 // pred_fallthru
      _
    %1407 = vsyncpa [#allocation3], 1
    %1408 = vsyncpa [#allocation6], 1
    %1409 = vsyncpa [#allocation9], 1
    %1410 = vsyncpa [#allocation4], 1
    %1411 = vsyncpa [#allocation12], 1

</llo_original>
